<compile_context>
chip_gen: v7x
topology: tpu7x:2x2x1
jax: 0.10.0
libtpu: 0.0.40
codegen_flags: <defaults>
</compile_context>

<pallas_src>
import math

import jax
import jax.numpy as jnp
from jax.experimental import pallas as pl
from jax.experimental.pallas import tpu as pltpu


def float_embedder_kernel(x_ref, w1_ref, b1_ref, w2_ref, b2_ref,
                          w3_ref, b3_ref, gamma_ref, beta_ref, mseg_ref,
                          o_ref):
    """Fused 3-layer MLP + segmented LayerNorm on lane-packed rows.

    x_ref:     (TP, G*D_in)   VMEM  (G original rows packed per register row)
    wK_ref:    block-diag kron(I_G, W_K)       VMEM, resident
    bK_ref:    (1, G*out_K)   VMEM, resident
    gamma/beta:(1, G*E)       VMEM, resident
    mseg_ref:  (G*E, G*E) = kron(I_G, 1/E)     VMEM, resident (segment mean)
    o_ref:     (TP, G*E)      VMEM
    """
    hp = jax.lax.Precision.HIGHEST
    x = x_ref[...].astype(jnp.float32)

    # Linear 1 + ReLU
    h = jnp.dot(x, w1_ref[...], preferred_element_type=jnp.float32, precision=hp)
    h = jnp.maximum(h + b1_ref[...], 0.0)
    # Linear 2 + ReLU
    h = jnp.dot(h, w2_ref[...], preferred_element_type=jnp.float32, precision=hp)
    h = jnp.maximum(h + b2_ref[...], 0.0)
    # Linear 3
    h = jnp.dot(h, w3_ref[...], preferred_element_type=jnp.float32, precision=hp)
    h = h + b3_ref[...]

    # LayerNorm over each E-lane group (eps matches nn.LayerNorm default 1e-5).
    # Segment mean/variance via matmul with kron(I_G, 1/E) on the idle MXU.
    mean = jnp.dot(h, mseg_ref[...], preferred_element_type=jnp.float32, precision=hp)
    c = h - mean
    var = jnp.dot(c * c, mseg_ref[...], preferred_element_type=jnp.float32, precision=hp)
    out = c * jax.lax.rsqrt(var + 1e-5)
    out = out * gamma_ref[...] + beta_ref[...]

    # TODO(synk): nn.Dropout is identity in eval mode; training-mode dropout
    # (pltpu.prng_random_bits mask) intentionally not applied here.
    o_ref[...] = out.astype(o_ref.dtype)


def kaiming_uniform(key, out_features, in_features, dtype=jnp.float32):
    # Matches the module's explicit init_weights():
    # torch.nn.init.kaiming_uniform_ defaults (a=0, mode='fan_in',
    # nonlinearity='leaky_relu') -> bound = sqrt(6 / fan_in); biases zeroed.
    # PyTorch weight is (out, in); sample that shape, transpose to (in, out).
    bound = math.sqrt(6.0 / in_features)
    w = jax.random.uniform(key, (out_features, in_features), dtype,
                           minval=-bound, maxval=bound)
    return w.T  # (in, out)


def make_float_embedder_params(key, input_dim, embed_dim, dtype=jnp.float32):
    h1 = embed_dim // 4
    h2 = embed_dim // 2
    k1, k2, k3 = jax.random.split(key, 3)
    return {
        "w1": kaiming_uniform(k1, h1, input_dim, dtype),
        "b1": jnp.zeros((1, h1), dtype),
        "w2": kaiming_uniform(k2, h2, h1, dtype),
        "b2": jnp.zeros((1, h2), dtype),
        "w3": kaiming_uniform(k3, embed_dim, h2, dtype),
        "b3": jnp.zeros((1, embed_dim), dtype),
        "gamma": jnp.ones((1, embed_dim), dtype),
        "beta": jnp.zeros((1, embed_dim), dtype),
    }


def _round_up(a, b):
    return (a + b - 1) // b * b


def float_embedder_forward(x, params, *, tile_rows_target=8192, out_dtype=None):
    """x: (..., input_dim) -> (..., embed_dim)."""
    input_dim = x.shape[-1]
    h1d = params["w1"].shape[1]
    h2d = params["w2"].shape[1]
    embed_dim = params["w3"].shape[1]
    out_dtype = out_dtype or x.dtype

    lead_shape = x.shape[:-1]
    n = 1
    for d in lead_shape:
        n *= d
    x2d = x.reshape(n, input_dim)

    # Lane-packing factor: G consecutive rows share one 128-lane vreg row.
    if embed_dim <= 128 and 128 % embed_dim == 0:
        g = 128 // embed_dim
    else:
        g = 1
    row_align = 8 * g  # packed second-minor dim must stay a multiple of 8

    tile_rows = min(int(tile_rows_target), _round_up(n, row_align))
    tile_rows = _round_up(tile_rows, row_align)
    n_pad = _round_up(n, tile_rows)
    if n_pad != n:
        x2d = jnp.pad(x2d, ((0, n_pad - n), (0, 0)))

    np_rows = n_pad // g          # packed rows
    tp = tile_rows // g           # packed rows per tile (multiple of 8)
    num_tiles = np_rows // tp

    # (n_pad, D) row-major == (n_pad/g, g*D) row-major: free reshape.
    xp = x2d.reshape(np_rows, g * input_dim)

    f32 = jnp.float32
    eye_g = jnp.eye(g, dtype=f32)
    w1 = jnp.kron(eye_g, params["w1"].astype(f32))
    w2 = jnp.kron(eye_g, params["w2"].astype(f32))
    w3 = jnp.kron(eye_g, params["w3"].astype(f32))
    b1 = jnp.tile(params["b1"].astype(f32), (1, g))
    b2 = jnp.tile(params["b2"].astype(f32), (1, g))
    b3 = jnp.tile(params["b3"].astype(f32), (1, g))
    gamma = jnp.tile(params["gamma"].astype(f32), (1, g))
    beta = jnp.tile(params["beta"].astype(f32), (1, g))
    mseg = jnp.kron(eye_g, jnp.full((embed_dim, embed_dim), 1.0 / embed_dim, f32))

    def const_spec(arr):
        # Full-array block, same block every grid step -> fetched once, resident.
        return pl.BlockSpec(arr.shape, lambda i: (0, 0))

    # Advisory cost: memory-bound (bytes >> flops).
    flops = 2 * n_pad * (input_dim * h1d + h1d * h2d + h2d * embed_dim) \
        + 8 * n_pad * embed_dim
    param_bytes = sum(int(a.size) * 4 for a in (w1, b1, w2, b2, w3, b3, gamma, beta, mseg))
    bytes_accessed = (n_pad * input_dim * x2d.dtype.itemsize
                      + n_pad * embed_dim * jnp.dtype(out_dtype).itemsize
                      + param_bytes)

    out_packed = pl.pallas_call(
        float_embedder_kernel,
        out_shape=jax.ShapeDtypeStruct((np_rows, g * embed_dim), out_dtype),
        grid=(num_tiles,),
        in_specs=[
            pl.BlockSpec((tp, g * input_dim), lambda i: (i, 0)),
            const_spec(w1), const_spec(b1),
            const_spec(w2), const_spec(b2),
            const_spec(w3), const_spec(b3),
            const_spec(gamma), const_spec(beta), const_spec(mseg),
        ],
        out_specs=pl.BlockSpec((tp, g * embed_dim), lambda i: (i, 0)),
        compiler_params=pltpu.CompilerParams(
            dimension_semantics=("parallel",),        # v7x megacore sharding
            vmem_limit_bytes=32 * 1024 * 1024,        # safe on v5e/v6e/v7x
        ),
        cost_estimate=pl.CostEstimate(
            flops=flops,
            transcendentals=n_pad * embed_dim,
            bytes_accessed=bytes_accessed,
        ),
    )(xp, w1, b1, w2, b2, w3, b3, gamma, beta, mseg)

    # (np_rows, g*E) is byte-identical to (n_pad, E) row-major: free reshape.
    out2d = out_packed.reshape(n_pad, embed_dim)[:n]
    return out2d.reshape(*lead_shape, embed_dim)


def _reference_forward(x2d, params):
    """Pure-JAX reference (same matmul precision as the kernel)."""
    hp = jax.lax.Precision.HIGHEST
    h = jnp.maximum(jnp.dot(x2d, params["w1"], precision=hp) + params["b1"], 0.0)
    h = jnp.maximum(jnp.dot(h, params["w2"], precision=hp) + params["b2"], 0.0)
    h = jnp.dot(h, params["w3"], precision=hp) + params["b3"]
    mean = jnp.mean(h, axis=-1, keepdims=True)
    var = jnp.mean((h - mean) ** 2, axis=-1, keepdims=True)
    h = (h - mean) * jax.lax.rsqrt(var + 1e-5)
    return h * params["gamma"] + params["beta"]


if __name__ == "__main__":
    key = jax.random.PRNGKey(0)
    k_param, k_x = jax.random.split(key)

    batch, seq = 2, 8
    input_dim, embed_dim, dropout = 4, 32, 0.1

    params = make_float_embedder_params(k_param, input_dim, embed_dim)
    x = jax.random.normal(k_x, (batch, seq, input_dim), dtype=jnp.float32)

    fwd = jax.jit(float_embedder_forward)
    y = jax.block_until_ready(fwd(x, params))

    y_ref = _reference_forward(x.reshape(-1, input_dim), params).reshape(
        batch, seq, embed_dim)
    assert y.shape == (batch, seq, embed_dim), y.shape
    assert jnp.allclose(y, y_ref, atol=1e-4, rtol=1e-4), \
        float(jnp.max(jnp.abs(y - y_ref)))

    print("KERNEL_OK")
</pallas_src>

<mosaic_0001>
module attributes {stable_mosaic.version = 11 : i64} {
  func.func @float_embedder_kernel(%arg0: i32, %arg1: memref<8x16xf32, #tpu.memory_space<vmem>>, %arg2: memref<16x32xf32, #tpu.memory_space<vmem>>, %arg3: memref<1x32xf32, #tpu.memory_space<vmem>>, %arg4: memref<32x64xf32, #tpu.memory_space<vmem>>, %arg5: memref<1x64xf32, #tpu.memory_space<vmem>>, %arg6: memref<64x128xf32, #tpu.memory_space<vmem>>, %arg7: memref<1x128xf32, #tpu.memory_space<vmem>>, %arg8: memref<1x128xf32, #tpu.memory_space<vmem>>, %arg9: memref<1x128xf32, #tpu.memory_space<vmem>>, %arg10: memref<128x128xf32, #tpu.memory_space<vmem>>, %arg11: memref<8x128xf32, #tpu.memory_space<vmem>>) attributes {dimension_semantics = [#tpu.dimension_semantics<parallel>], iteration_bounds = array<i64: 1>, scalar_prefetch = 0 : i64, scratch_operands = 0 : i64, tpu.core_type = #tpu.core_type<tc>, window_params = [{transform_indices = @transform_0, window_bounds = array<i64: 8, 16>}, {pipeline_mode = #tpu.pipeline_mode<synchronous>, transform_indices = @transform_1, window_bounds = array<i64: 16, 32>}, {pipeline_mode = #tpu.pipeline_mode<synchronous>, transform_indices = @transform_2, window_bounds = array<i64: 1, 32>}, {pipeline_mode = #tpu.pipeline_mode<synchronous>, transform_indices = @transform_3, window_bounds = array<i64: 32, 64>}, {pipeline_mode = #tpu.pipeline_mode<synchronous>, transform_indices = @transform_4, window_bounds = array<i64: 1, 64>}, {pipeline_mode = #tpu.pipeline_mode<synchronous>, transform_indices = @transform_5, window_bounds = array<i64: 64, 128>}, {pipeline_mode = #tpu.pipeline_mode<synchronous>, transform_indices = @transform_6, window_bounds = array<i64: 1, 128>}, {pipeline_mode = #tpu.pipeline_mode<synchronous>, transform_indices = @transform_7, window_bounds = array<i64: 1, 128>}, {pipeline_mode = #tpu.pipeline_mode<synchronous>, transform_indices = @transform_8, window_bounds = array<i64: 1, 128>}, {pipeline_mode = #tpu.pipeline_mode<synchronous>, transform_indices = @transform_9, window_bounds = array<i64: 128, 128>}, {transform_indices = @transform_10, window_bounds = array<i64: 8, 128>}]} {
    %c0 = arith.constant 0 : index
    %c0_0 = arith.constant 0 : index
    %0 = vector.load %arg1[%c0, %c0_0] : memref<8x16xf32, #tpu.memory_space<vmem>>, vector<8x16xf32>
    %c0_1 = arith.constant 0 : index
    %c0_2 = arith.constant 0 : index
    %1 = vector.load %arg2[%c0_1, %c0_2] : memref<16x32xf32, #tpu.memory_space<vmem>>, vector<16x32xf32>
    %cst = arith.constant dense<0.000000e+00> : vector<8x32xf32>
    %2 = tpu.matmul %0, %1, %cst {dimension_numbers = #tpu.dot_dimension_numbers<[1], [0], [0], [1], [0, 0, 1, 1], [], []>, precision = #tpu.contract_precision<fp32>} : vector<8x16xf32>, vector<16x32xf32>, vector<8x32xf32> -> vector<8x32xf32>
    %c0_3 = arith.constant 0 : index
    %c0_4 = arith.constant 0 : index
    %3 = vector.load %arg3[%c0_3, %c0_4] : memref<1x32xf32, #tpu.memory_space<vmem>>, vector<1x32xf32>
    %4 = vector.broadcast %3 : vector<1x32xf32> to vector<8x32xf32>
    %5 = arith.addf %2, %4 : vector<8x32xf32>
    %cst_5 = arith.constant 0.000000e+00 : f32
    %6 = vector.broadcast %cst_5 : f32 to vector<8x32xf32>
    %7 = arith.maximumf %5, %6 : vector<8x32xf32>
    %c0_6 = arith.constant 0 : index
    %c0_7 = arith.constant 0 : index
    %8 = vector.load %arg4[%c0_6, %c0_7] : memref<32x64xf32, #tpu.memory_space<vmem>>, vector<32x64xf32>
    %cst_8 = arith.constant dense<0.000000e+00> : vector<8x64xf32>
    %9 = tpu.matmul %7, %8, %cst_8 {dimension_numbers = #tpu.dot_dimension_numbers<[1], [0], [0], [1], [0, 0, 1, 1], [], []>, precision = #tpu.contract_precision<fp32>} : vector<8x32xf32>, vector<32x64xf32>, vector<8x64xf32> -> vector<8x64xf32>
    %c0_9 = arith.constant 0 : index
    %c0_10 = arith.constant 0 : index
    %10 = vector.load %arg5[%c0_9, %c0_10] : memref<1x64xf32, #tpu.memory_space<vmem>>, vector<1x64xf32>
    %11 = vector.broadcast %10 : vector<1x64xf32> to vector<8x64xf32>
    %12 = arith.addf %9, %11 : vector<8x64xf32>
    %cst_11 = arith.constant 0.000000e+00 : f32
    %13 = vector.broadcast %cst_11 : f32 to vector<8x64xf32>
    %14 = arith.maximumf %12, %13 : vector<8x64xf32>
    %c0_12 = arith.constant 0 : index
    %c0_13 = arith.constant 0 : index
    %15 = vector.load %arg6[%c0_12, %c0_13] : memref<64x128xf32, #tpu.memory_space<vmem>>, vector<64x128xf32>
    %cst_14 = arith.constant dense<0.000000e+00> : vector<8x128xf32>
    %16 = tpu.matmul %14, %15, %cst_14 {dimension_numbers = #tpu.dot_dimension_numbers<[1], [0], [0], [1], [0, 0, 1, 1], [], []>, precision = #tpu.contract_precision<fp32>} : vector<8x64xf32>, vector<64x128xf32>, vector<8x128xf32> -> vector<8x128xf32>
    %c0_15 = arith.constant 0 : index
    %c0_16 = arith.constant 0 : index
    %17 = vector.load %arg7[%c0_15, %c0_16] : memref<1x128xf32, #tpu.memory_space<vmem>>, vector<1x128xf32>
    %18 = vector.broadcast %17 : vector<1x128xf32> to vector<8x128xf32>
    %19 = arith.addf %16, %18 : vector<8x128xf32>
    %c0_17 = arith.constant 0 : index
    %c0_18 = arith.constant 0 : index
    %20 = vector.load %arg10[%c0_17, %c0_18] : memref<128x128xf32, #tpu.memory_space<vmem>>, vector<128x128xf32>
    %cst_19 = arith.constant dense<0.000000e+00> : vector<8x128xf32>
    %21 = tpu.matmul %19, %20, %cst_19 {dimension_numbers = #tpu.dot_dimension_numbers<[1], [0], [0], [1], [0, 0, 1, 1], [], []>, precision = #tpu.contract_precision<fp32>} : vector<8x128xf32>, vector<128x128xf32>, vector<8x128xf32> -> vector<8x128xf32>
    %22 = arith.subf %19, %21 : vector<8x128xf32>
    %23 = arith.mulf %22, %22 : vector<8x128xf32>
    %c0_20 = arith.constant 0 : index
    %c0_21 = arith.constant 0 : index
    %24 = vector.load %arg10[%c0_20, %c0_21] : memref<128x128xf32, #tpu.memory_space<vmem>>, vector<128x128xf32>
    %cst_22 = arith.constant dense<0.000000e+00> : vector<8x128xf32>
    %25 = tpu.matmul %23, %24, %cst_22 {dimension_numbers = #tpu.dot_dimension_numbers<[1], [0], [0], [1], [0, 0, 1, 1], [], []>, precision = #tpu.contract_precision<fp32>} : vector<8x128xf32>, vector<128x128xf32>, vector<8x128xf32> -> vector<8x128xf32>
    %cst_23 = arith.constant 9.99999974E-6 : f32
    %26 = vector.broadcast %cst_23 : f32 to vector<8x128xf32>
    %27 = arith.addf %25, %26 : vector<8x128xf32>
    %28 = math.rsqrt %27 : vector<8x128xf32>
    %29 = arith.mulf %22, %28 : vector<8x128xf32>
    %c0_24 = arith.constant 0 : index
    %c0_25 = arith.constant 0 : index
    %30 = vector.load %arg8[%c0_24, %c0_25] : memref<1x128xf32, #tpu.memory_space<vmem>>, vector<1x128xf32>
    %31 = vector.broadcast %30 : vector<1x128xf32> to vector<8x128xf32>
    %32 = arith.mulf %29, %31 : vector<8x128xf32>
    %c0_26 = arith.constant 0 : index
    %c0_27 = arith.constant 0 : index
    %33 = vector.load %arg9[%c0_26, %c0_27] : memref<1x128xf32, #tpu.memory_space<vmem>>, vector<1x128xf32>
    %34 = vector.broadcast %33 : vector<1x128xf32> to vector<8x128xf32>
    %35 = arith.addf %32, %34 : vector<8x128xf32>
    %c0_28 = arith.constant 0 : index
    %c0_29 = arith.constant 0 : index
    %36 = vector.load %arg11[%c0_28, %c0_29] : memref<8x128xf32, #tpu.memory_space<vmem>>, vector<8x128xf32>
    tpu.vector_store %arg11[%c0_28, %c0_29], %35 {strides = array<i32>} : memref<8x128xf32, #tpu.memory_space<vmem>>, vector<8x128xf32>,
    return
  }
  func.func @transform_0(%arg0: i32) -> (i32, i32) {
    %c0_i32 = arith.constant 0 : i32
    %c0_i32_0 = arith.constant 0 : i32
    return %arg0, %c0_i32 : i32, i32
  }
  func.func @transform_1(%arg0: i32) -> (i32, i32) {
    %c0_i32 = arith.constant 0 : i32
    %c0_i32_0 = arith.constant 0 : i32
    %c0_i32_1 = arith.constant 0 : i32
    return %c0_i32, %c0_i32_0 : i32, i32
  }
  func.func @transform_2(%arg0: i32) -> (i32, i32) {
    %c0_i32 = arith.constant 0 : i32
    %c0_i32_0 = arith.constant 0 : i32
    %c0_i32_1 = arith.constant 0 : i32
    return %c0_i32, %c0_i32_0 : i32, i32
  }
  func.func @transform_3(%arg0: i32) -> (i32, i32) {
    %c0_i32 = arith.constant 0 : i32
    %c0_i32_0 = arith.constant 0 : i32
    %c0_i32_1 = arith.constant 0 : i32
    return %c0_i32, %c0_i32_0 : i32, i32
  }
  func.func @transform_4(%arg0: i32) -> (i32, i32) {
    %c0_i32 = arith.constant 0 : i32
    %c0_i32_0 = arith.constant 0 : i32
    %c0_i32_1 = arith.constant 0 : i32
    return %c0_i32, %c0_i32_0 : i32, i32
  }
  func.func @transform_5(%arg0: i32) -> (i32, i32) {
    %c0_i32 = arith.constant 0 : i32
    %c0_i32_0 = arith.constant 0 : i32
    %c0_i32_1 = arith.constant 0 : i32
    return %c0_i32, %c0_i32_0 : i32, i32
  }
  func.func @transform_6(%arg0: i32) -> (i32, i32) {
    %c0_i32 = arith.constant 0 : i32
    %c0_i32_0 = arith.constant 0 : i32
    %c0_i32_1 = arith.constant 0 : i32
    return %c0_i32, %c0_i32_0 : i32, i32
  }
  func.func @transform_7(%arg0: i32) -> (i32, i32) {
    %c0_i32 = arith.constant 0 : i32
    %c0_i32_0 = arith.constant 0 : i32
    %c0_i32_1 = arith.constant 0 : i32
    return %c0_i32, %c0_i32_0 : i32, i32
  }
  func.func @transform_8(%arg0: i32) -> (i32, i32) {
    %c0_i32 = arith.constant 0 : i32
    %c0_i32_0 = arith.constant 0 : i32
    %c0_i32_1 = arith.constant 0 : i32
    return %c0_i32, %c0_i32_0 : i32, i32
  }
  func.func @transform_9(%arg0: i32) -> (i32, i32) {
    %c0_i32 = arith.constant 0 : i32
    %c0_i32_0 = arith.constant 0 : i32
    %c0_i32_1 = arith.constant 0 : i32
    return %c0_i32, %c0_i32_0 : i32, i32
  }
  func.func @transform_10(%arg0: i32) -> (i32, i32) {
    %c0_i32 = arith.constant 0 : i32
    %c0_i32_0 = arith.constant 0 : i32
    return %arg0, %c0_i32 : i32, i32
  }
}

</mosaic_0001>

<llo_original>
// kernel: float_embedder_forward.1
$region0: #{float_embedder_forward.1}
  #allocation0 [shape = 'u32[]', space=smem, size = 0x4, offset = 0x4, fixed_abs, tag = 'smem constant byte address 0x4 - core index']
  #allocation1 [shape = 'u32[144,128]{1,0:T(1,128)}', space=vmem, size = 0x12000, scoped, tag = 'internal scratch']
  %s0 = inlined_call_operand.vmem [shape: f32[8,16], index: 0, kind: input, shape index: {}]
  %s1 = inlined_call_operand.vmem [shape: f32[16,32], index: 1, kind: input, shape index: {}]
  %s2 = inlined_call_operand.vmem [shape: f32[1,32], index: 2, kind: input, shape index: {}]
  %s3 = inlined_call_operand.vmem [shape: f32[32,64], index: 3, kind: input, shape index: {}]
  %s4 = inlined_call_operand.vmem [shape: f32[1,64], index: 4, kind: input, shape index: {}]
  %s5 = inlined_call_operand.vmem [shape: f32[64,128], index: 5, kind: input, shape index: {}]
  %s6 = inlined_call_operand.vmem [shape: f32[1,128], index: 6, kind: input, shape index: {}]
  %s7 = inlined_call_operand.vmem [shape: f32[1,128], index: 7, kind: input, shape index: {}]
  %s8 = inlined_call_operand.vmem [shape: f32[1,128], index: 8, kind: input, shape index: {}]
  %s9 = inlined_call_operand.vmem [shape: f32[128,128], index: 9, kind: input, shape index: {}]
  %s10 = inlined_call_operand.vmem [shape: f32[8,128], index: 10, kind: output, shape index: {}]
  %s11 = sld [smem:[#allocation0]]
  $region50: #{float_embedder_forward.1} parent=0
    _
  %s13 = ssub.s32 1, %s11
  %s14 = scalar_select 0, %s13, %s11
  // Predicated region
  $region2: #{float_embedder_forward.1} parent=0 // pred_check
    _
  $region3: #{float_embedder_forward.1} parent=0 // pred_check_branch
    %16 = sbr.rel (0) target = $region5
  $region4: #{float_embedder_forward.1} parent=0 // pred_region
    _
  $region5: #{float_embedder_forward.1} parent=0 // pred_fallthru
    _
  // Predicated region
  $region6: #{float_embedder_forward.1} parent=0 // pred_check
    _
  $region7: #{float_embedder_forward.1} parent=0 // pred_check_branch
    %18 = sbr.rel (0) target = $region9
  $region8: #{float_embedder_forward.1} parent=0 // pred_region
    _
  $region9: #{float_embedder_forward.1} parent=0 // pred_fallthru
    _
  // Predicated region
  $region10: #{float_embedder_forward.1} parent=0 // pred_check
    _
  $region11: #{float_embedder_forward.1} parent=0 // pred_check_branch
    %20 = sbr.rel (0) target = $region13
  $region12: #{float_embedder_forward.1} parent=0 // pred_region
    _
  $region13: #{float_embedder_forward.1} parent=0 // pred_fallthru
    _
  // Predicated region
  $region14: #{float_embedder_forward.1} parent=0 // pred_check
    _
  $region15: #{float_embedder_forward.1} parent=0 // pred_check_branch
    %22 = sbr.rel (0) target = $region17
  $region16: #{float_embedder_forward.1} parent=0 // pred_region
    _
  $region17: #{float_embedder_forward.1} parent=0 // pred_fallthru
    _
  // Predicated region
  $region18: #{float_embedder_forward.1} parent=0 // pred_check
    _
  $region19: #{float_embedder_forward.1} parent=0 // pred_check_branch
    %24 = sbr.rel (0) target = $region21
  $region20: #{float_embedder_forward.1} parent=0 // pred_region
    _
  $region21: #{float_embedder_forward.1} parent=0 // pred_fallthru
    _
  // Predicated region
  $region22: #{float_embedder_forward.1} parent=0 // pred_check
    _
  $region23: #{float_embedder_forward.1} parent=0 // pred_check_branch
    %26 = sbr.rel (0) target = $region25
  $region24: #{float_embedder_forward.1} parent=0 // pred_region
    _
  $region25: #{float_embedder_forward.1} parent=0 // pred_fallthru
    _
  // Predicated region
  $region26: #{float_embedder_forward.1} parent=0 // pred_check
    _
  $region27: #{float_embedder_forward.1} parent=0 // pred_check_branch
    %28 = sbr.rel (0) target = $region29
  $region28: #{float_embedder_forward.1} parent=0 // pred_region
    _
  $region29: #{float_embedder_forward.1} parent=0 // pred_fallthru
    _
  // Predicated region
  $region30: #{float_embedder_forward.1} parent=0 // pred_check
    _
  $region31: #{float_embedder_forward.1} parent=0 // pred_check_branch
    %30 = sbr.rel (0) target = $region33
  $region32: #{float_embedder_forward.1} parent=0 // pred_region
    _
  $region33: #{float_embedder_forward.1} parent=0 // pred_fallthru
    _
  // Predicated region
  $region34: #{float_embedder_forward.1} parent=0 // pred_check
    _
  $region35: #{float_embedder_forward.1} parent=0 // pred_check_branch
    %32 = sbr.rel (0) target = $region37
  $region36: #{float_embedder_forward.1} parent=0 // pred_region
    _
  $region37: #{float_embedder_forward.1} parent=0 // pred_fallthru
    _
  // Predicated region
  $region38: #{float_embedder_forward.1} parent=0 // pred_check
    _
  $region39: #{float_embedder_forward.1} parent=0 // pred_check_branch
    %34 = sbr.rel (0) target = $region41
  $region40: #{float_embedder_forward.1} parent=0 // pred_region
    _
  $region41: #{float_embedder_forward.1} parent=0 // pred_fallthru
    _
  %v35 = vld [vmem:[%s0] sm:$0xff]
  %v36 = vld [vmem:[%s1] sm:$0xff]
  %v37 = vld [vmem:[%s1 + $0x8] sm:$0xff]
  %v38 = vld [vmem:[%s2] sm:$0x1]
  %v40 = vlaneseq
  %v41 = vshrl.u32 %v40, 7
  %v42 = vsub.s32 0, %v41
  %v43 = vrot.slane %v38, %v42
  %vm45 = vcmask 130048
  %v47 = vsel %vm45, %v35, 0
  %49 = vmatprep.subr.mxu0 0.0
  %v50 = vand.u32 %v36, 4294901760
  %51 = vmatpush1.msra.mxu0 %v50
  %52 = vmatprep.subr.mxu0 0.0
  %v53 = vand.u32 %v37, 4294901760
  %54 = vmatpush1.msra.mxu0 %v53
  %55 = vmatprep.subr.mxu0 0.0
  %56 = vmatpush1.msra.mxu0 0.0
  %57 = vmatprep.subr.mxu0 0.0
  %58 = vmatpush1.msra.mxu0 0.0
  %59 = vmatprep.subr.mxu0 0.0
  %60 = vmatpush1.msra.mxu0 0.0
  %61 = vmatprep.subr.mxu0 0.0
  %62 = vmatpush1.msra.mxu0 0.0
  %63 = vmatprep.subr.mxu0 0.0
  %64 = vmatpush1.msra.mxu0 0.0
  %65 = vmatprep.subr.mxu0 0.0
  %66 = vmatpush1.msra.mxu0 0.0
  %67 = vmatprep.subr.mxu0 0.0
  %68 = vmatpush1.msra.mxu0 0.0
  %69 = vmatprep.subr.mxu0 0.0
  %70 = vmatpush1.msra.mxu0 0.0
  %71 = vmatprep.subr.mxu0 0.0
  %72 = vmatpush1.msra.mxu0 0.0
  %73 = vmatprep.subr.mxu0 0.0
  %74 = vmatpush1.msra.mxu0 0.0
  %75 = vmatprep.subr.mxu0 0.0
  %76 = vmatpush1.msra.mxu0 0.0
  %77 = vmatprep.subr.mxu0 0.0
  %78 = vmatpush1.msra.mxu0 0.0
  %79 = vmatprep.subr.mxu0 0.0
  %80 = vmatpush1.msra.mxu0 0.0
  %81 = vmatprep.subr.mxu0 0.0
  %82 = vmatpush1.msra.mxu0 0.0
  %83 = vmatprep.subr.mxu0 0.0
  %84 = vmatpush1.msra.mxu0 0.0
  %85 = vmatprep.subr.mxu0 0.0
  %86 = vmatpush1.msra.mxu0 0.0
  %87 = vmatprep.subr.mxu0 0.0
  %88 = vmatpush1.msra.mxu0 0.0
  %89 = vmatprep.subr.mxu0 0.0
  %90 = vmatpush1.msra.mxu0 0.0
  %91 = vmatprep.subr.mxu0 0.0
  %92 = vmatpush1.msra.mxu0 0.0
  %93 = vmatprep.subr.mxu0 0.0
  %94 = vmatpush1.msra.mxu0 0.0
  %95 = vmatprep.subr.mxu0 0.0
  %96 = vmatpush1.msra.mxu0 0.0
  %97 = vmatprep.subr.mxu0 0.0
  %98 = vmatpush1.msra.mxu0 0.0
  %99 = vmatprep.subr.mxu0 0.0
  %100 = vmatpush1.msra.mxu0 0.0
  %101 = vmatprep.subr.mxu0 0.0
  %102 = vmatpush1.msra.mxu0 0.0
  %103 = vmatprep.subr.mxu0 0.0
  %104 = vmatpush1.msra.mxu0 0.0
  %105 = vmatprep.subr.mxu0 0.0
  %106 = vmatpush1.msra.mxu0 0.0
  %107 = vmatprep.subr.mxu0 0.0
  %108 = vmatpush1.msra.mxu0 0.0
  %109 = vmatprep.subr.mxu0 0.0
  %110 = vmatpush1.msra.mxu0 0.0
  %111 = vmatprep.subr.mxu0 0.0
  %112 = vmatpush1.msra.mxu0 0.0
  %113 = vmatprep.subr.mxu0 0.0
  %114 = vmatpush1.msra.mxu0 0.0
  %115 = vmatprep.mubr.f32.mxu0 0.0
  %v116 = vand.u32 %v47, 4294901760
  %v117 = vsub.f32 %v47, %v116
  %v118 = vand.u32 %v117, 4294901760
  %v119 = vsub.f32 %v117, %v118
  %v120 = vand.u32 %v119, 4294901760
  %121 = vmatmul.mubr.f32.gmra.mrb[0].mxu0 %v120
  %v122 = vpop.f32.mrb[0].mxu0
  %v123 = vadd.f32 %v43, %v122
  %v124 = vpop.f32.mrb[0].mxu0
  %125 = vdwg.mxu0
  %126 = vmatprep.subr.mxu0 0.0
  %v127 = vand.u32 %v36, 4294901760
  %v128 = vsub.f32 %v36, %v127
  %v129 = vand.u32 %v128, 4294901760
  %v130 = vsub.f32 %v128, %v129
  %v131 = vand.u32 %v130, 4294901760
  %132 = vmatpush1.msra.mxu0 %v131
  %133 = vmatprep.subr.mxu0 0.0
  %v134 = vand.u32 %v37, 4294901760
  %v135 = vsub.f32 %v37, %v134
  %v136 = vand.u32 %v135, 4294901760
  %v137 = vsub.f32 %v135, %v136
  %v138 = vand.u32 %v137, 4294901760
  %139 = vmatpush1.msra.mxu0 %v138
  %140 = vmatprep.subr.mxu0 0.0
  %141 = vmatpush1.msra.mxu0 0.0
  %142 = vmatprep.subr.mxu0 0.0
  %143 = vmatpush1.msra.mxu0 0.0
  %144 = vmatprep.subr.mxu0 0.0
  %145 = vmatpush1.msra.mxu0 0.0
  %146 = vmatprep.subr.mxu0 0.0
  %147 = vmatpush1.msra.mxu0 0.0
  %148 = vmatprep.subr.mxu0 0.0
  %149 = vmatpush1.msra.mxu0 0.0
  %150 = vmatprep.subr.mxu0 0.0
  %151 = vmatpush1.msra.mxu0 0.0
  %152 = vmatprep.subr.mxu0 0.0
  %153 = vmatpush1.msra.mxu0 0.0
  %154 = vmatprep.subr.mxu0 0.0
  %155 = vmatpush1.msra.mxu0 0.0
  %156 = vmatprep.subr.mxu0 0.0
  %157 = vmatpush1.msra.mxu0 0.0
  %158 = vmatprep.subr.mxu0 0.0
  %159 = vmatpush1.msra.mxu0 0.0
  %160 = vmatprep.subr.mxu0 0.0
  %161 = vmatpush1.msra.mxu0 0.0
  %162 = vmatprep.subr.mxu0 0.0
  %163 = vmatpush1.msra.mxu0 0.0
  %164 = vmatprep.subr.mxu0 0.0
  %165 = vmatpush1.msra.mxu0 0.0
  %166 = vmatprep.subr.mxu0 0.0
  %167 = vmatpush1.msra.mxu0 0.0
  %168 = vmatprep.subr.mxu0 0.0
  %169 = vmatpush1.msra.mxu0 0.0
  %170 = vmatprep.subr.mxu0 0.0
  %171 = vmatpush1.msra.mxu0 0.0
  %172 = vmatprep.subr.mxu0 0.0
  %173 = vmatpush1.msra.mxu0 0.0
  %174 = vmatprep.subr.mxu0 0.0
  %175 = vmatpush1.msra.mxu0 0.0
  %176 = vmatprep.subr.mxu0 0.0
  %177 = vmatpush1.msra.mxu0 0.0
  %178 = vmatprep.subr.mxu0 0.0
  %179 = vmatpush1.msra.mxu0 0.0
  %180 = vmatprep.subr.mxu0 0.0
  %181 = vmatpush1.msra.mxu0 0.0
  %182 = vmatprep.subr.mxu0 0.0
  %183 = vmatpush1.msra.mxu0 0.0
  %184 = vmatprep.subr.mxu0 0.0
  %185 = vmatpush1.msra.mxu0 0.0
  %186 = vmatprep.subr.mxu0 0.0
  %187 = vmatpush1.msra.mxu0 0.0
  %188 = vmatprep.subr.mxu0 0.0
  %189 = vmatpush1.msra.mxu0 0.0
  %190 = vmatprep.subr.mxu0 0.0
  %191 = vmatpush1.msra.mxu0 0.0
  %192 = vmatprep.subr.mxu0 0.0
  %193 = vmatpush1.msra.mxu0 0.0
  %194 = vmatprep.subr.mxu0 0.0
  %195 = vmatpush1.msra.mxu0 0.0
  %196 = vmatprep.subr.mxu0 0.0
  %197 = vmatpush1.msra.mxu0 0.0
  %198 = vmatprep.subr.mxu0 0.0
  %199 = vmatpush1.msra.mxu0 0.0
  %200 = vmatprep.mubr.f32.mxu0 0.0
  %v201 = vand.u32 %v47, 4294901760
  %202 = vmatmul.mubr.f32.gmra.mrb[0].mxu0 %v201
  %v203 = vpop.f32.mrb[0].mxu0
  %v204 = vadd.f32 %v123, %v203
  %v205 = vpop.f32.mrb[0].mxu0
  %206 = vdwg.mxu0
  %207 = vmatprep.subr.mxu0 0.0
  %v208 = vand.u32 %v36, 4294901760
  %v209 = vsub.f32 %v36, %v208
  %210 = vmatpush1.msra.mxu0 %v209
  %211 = vmatprep.subr.mxu0 0.0
  %v212 = vand.u32 %v37, 4294901760
  %v213 = vsub.f32 %v37, %v212
  %214 = vmatpush1.msra.mxu0 %v213
  %215 = vmatprep.subr.mxu0 0.0
  %216 = vmatpush1.msra.mxu0 0.0
  %217 = vmatprep.subr.mxu0 0.0
  %218 = vmatpush1.msra.mxu0 0.0
  %219 = vmatprep.subr.mxu0 0.0
  %220 = vmatpush1.msra.mxu0 0.0
  %221 = vmatprep.subr.mxu0 0.0
  %222 = vmatpush1.msra.mxu0 0.0
  %223 = vmatprep.subr.mxu0 0.0
  %224 = vmatpush1.msra.mxu0 0.0
  %225 = vmatprep.subr.mxu0 0.0
  %226 = vmatpush1.msra.mxu0 0.0
  %227 = vmatprep.subr.mxu0 0.0
  %228 = vmatpush1.msra.mxu0 0.0
  %229 = vmatprep.subr.mxu0 0.0
  %230 = vmatpush1.msra.mxu0 0.0
  %231 = vmatprep.subr.mxu0 0.0
  %232 = vmatpush1.msra.mxu0 0.0
  %233 = vmatprep.subr.mxu0 0.0
  %234 = vmatpush1.msra.mxu0 0.0
  %235 = vmatprep.subr.mxu0 0.0
  %236 = vmatpush1.msra.mxu0 0.0
  %237 = vmatprep.subr.mxu0 0.0
  %238 = vmatpush1.msra.mxu0 0.0
  %239 = vmatprep.subr.mxu0 0.0
  %240 = vmatpush1.msra.mxu0 0.0
  %241 = vmatprep.subr.mxu0 0.0
  %242 = vmatpush1.msra.mxu0 0.0
  %243 = vmatprep.subr.mxu0 0.0
  %244 = vmatpush1.msra.mxu0 0.0
  %245 = vmatprep.subr.mxu0 0.0
  %246 = vmatpush1.msra.mxu0 0.0
  %247 = vmatprep.subr.mxu0 0.0
  %248 = vmatpush1.msra.mxu0 0.0
  %249 = vmatprep.subr.mxu0 0.0
  %250 = vmatpush1.msra.mxu0 0.0
  %251 = vmatprep.subr.mxu0 0.0
  %252 = vmatpush1.msra.mxu0 0.0
  %253 = vmatprep.subr.mxu0 0.0
  %254 = vmatpush1.msra.mxu0 0.0
  %255 = vmatprep.subr.mxu0 0.0
  %256 = vmatpush1.msra.mxu0 0.0
  %257 = vmatprep.subr.mxu0 0.0
  %258 = vmatpush1.msra.mxu0 0.0
  %259 = vmatprep.subr.mxu0 0.0
  %260 = vmatpush1.msra.mxu0 0.0
  %261 = vmatprep.subr.mxu0 0.0
  %262 = vmatpush1.msra.mxu0 0.0
  %263 = vmatprep.subr.mxu0 0.0
  %264 = vmatpush1.msra.mxu0 0.0
  %265 = vmatprep.subr.mxu0 0.0
  %266 = vmatpush1.msra.mxu0 0.0
  %267 = vmatprep.subr.mxu0 0.0
  %268 = vmatpush1.msra.mxu0 0.0
  %269 = vmatprep.subr.mxu0 0.0
  %270 = vmatpush1.msra.mxu0 0.0
  %271 = vmatprep.subr.mxu0 0.0
  %272 = vmatpush1.msra.mxu0 0.0
  %273 = vmatprep.subr.mxu0 0.0
  %274 = vmatpush1.msra.mxu0 0.0
  %275 = vmatprep.mubr.f32.mxu0 0.0
  %v276 = vand.u32 %v47, 4294901760
  %v277 = vsub.f32 %v47, %v276
  %278 = vmatmul.mubr.f32.gmra.mrb[0].mxu0 %v277
  %v279 = vpop.f32.mrb[0].mxu0
  %v280 = vadd.f32 %v204, %v279
  %v281 = vpop.f32.mrb[0].mxu0
  %282 = vdwg.mxu0
  %283 = vmatprep.subr.mxu0 0.0
  %v284 = vand.u32 %v36, 4294901760
  %285 = vmatpush1.msra.mxu0 %v284
  %286 = vmatprep.subr.mxu0 0.0
  %v287 = vand.u32 %v37, 4294901760
  %288 = vmatpush1.msra.mxu0 %v287
  %289 = vmatprep.subr.mxu0 0.0
  %290 = vmatpush1.msra.mxu0 0.0
  %291 = vmatprep.subr.mxu0 0.0
  %292 = vmatpush1.msra.mxu0 0.0
  %293 = vmatprep.subr.mxu0 0.0
  %294 = vmatpush1.msra.mxu0 0.0
  %295 = vmatprep.subr.mxu0 0.0
  %296 = vmatpush1.msra.mxu0 0.0
  %297 = vmatprep.subr.mxu0 0.0
  %298 = vmatpush1.msra.mxu0 0.0
  %299 = vmatprep.subr.mxu0 0.0
  %300 = vmatpush1.msra.mxu0 0.0
  %301 = vmatprep.subr.mxu0 0.0
  %302 = vmatpush1.msra.mxu0 0.0
  %303 = vmatprep.subr.mxu0 0.0
  %304 = vmatpush1.msra.mxu0 0.0
  %305 = vmatprep.subr.mxu0 0.0
  %306 = vmatpush1.msra.mxu0 0.0
  %307 = vmatprep.subr.mxu0 0.0
  %308 = vmatpush1.msra.mxu0 0.0
  %309 = vmatprep.subr.mxu0 0.0
  %310 = vmatpush1.msra.mxu0 0.0
  %311 = vmatprep.subr.mxu0 0.0
  %312 = vmatpush1.msra.mxu0 0.0
  %313 = vmatprep.subr.mxu0 0.0
  %314 = vmatpush1.msra.mxu0 0.0
  %315 = vmatprep.subr.mxu0 0.0
  %316 = vmatpush1.msra.mxu0 0.0
  %317 = vmatprep.subr.mxu0 0.0
  %318 = vmatpush1.msra.mxu0 0.0
  %319 = vmatprep.subr.mxu0 0.0
  %320 = vmatpush1.msra.mxu0 0.0
  %321 = vmatprep.subr.mxu0 0.0
  %322 = vmatpush1.msra.mxu0 0.0
  %323 = vmatprep.subr.mxu0 0.0
  %324 = vmatpush1.msra.mxu0 0.0
  %325 = vmatprep.subr.mxu0 0.0
  %326 = vmatpush1.msra.mxu0 0.0
  %327 = vmatprep.subr.mxu0 0.0
  %328 = vmatpush1.msra.mxu0 0.0
  %329 = vmatprep.subr.mxu0 0.0
  %330 = vmatpush1.msra.mxu0 0.0
  %331 = vmatprep.subr.mxu0 0.0
  %332 = vmatpush1.msra.mxu0 0.0
  %333 = vmatprep.subr.mxu0 0.0
  %334 = vmatpush1.msra.mxu0 0.0
  %335 = vmatprep.subr.mxu0 0.0
  %336 = vmatpush1.msra.mxu0 0.0
  %337 = vmatprep.subr.mxu0 0.0
  %338 = vmatpush1.msra.mxu0 0.0
  %339 = vmatprep.subr.mxu0 0.0
  %340 = vmatpush1.msra.mxu0 0.0
  %341 = vmatprep.subr.mxu0 0.0
  %342 = vmatpush1.msra.mxu0 0.0
  %343 = vmatprep.subr.mxu0 0.0
  %344 = vmatpush1.msra.mxu0 0.0
  %345 = vmatprep.subr.mxu0 0.0
  %346 = vmatpush1.msra.mxu0 0.0
  %347 = vmatprep.subr.mxu0 0.0
  %348 = vmatpush1.msra.mxu0 0.0
  %349 = vmatprep.mubr.f32.mxu0 0.0
  %v350 = vand.u32 %v47, 4294901760
  %v351 = vsub.f32 %v47, %v350
  %v352 = vand.u32 %v351, 4294901760
  %353 = vmatmul.mubr.f32.gmra.mrb[0].mxu0 %v352
  %v354 = vpop.f32.mrb[0].mxu0
  %v355 = vadd.f32 %v280, %v354
  %v356 = vpop.f32.mrb[0].mxu0
  %357 = vdwg.mxu0
  %358 = vmatprep.subr.mxu0 0.0
  %v359 = vand.u32 %v36, 4294901760
  %v360 = vsub.f32 %v36, %v359
  %v361 = vand.u32 %v360, 4294901760
  %362 = vmatpush1.msra.mxu0 %v361
  %363 = vmatprep.subr.mxu0 0.0
  %v364 = vand.u32 %v37, 4294901760
  %v365 = vsub.f32 %v37, %v364
  %v366 = vand.u32 %v365, 4294901760
  %367 = vmatpush1.msra.mxu0 %v366
  %368 = vmatprep.subr.mxu0 0.0
  %369 = vmatpush1.msra.mxu0 0.0
  %370 = vmatprep.subr.mxu0 0.0
  %371 = vmatpush1.msra.mxu0 0.0
  %372 = vmatprep.subr.mxu0 0.0
  %373 = vmatpush1.msra.mxu0 0.0
  %374 = vmatprep.subr.mxu0 0.0
  %375 = vmatpush1.msra.mxu0 0.0
  %376 = vmatprep.subr.mxu0 0.0
  %377 = vmatpush1.msra.mxu0 0.0
  %378 = vmatprep.subr.mxu0 0.0
  %379 = vmatpush1.msra.mxu0 0.0
  %380 = vmatprep.subr.mxu0 0.0
  %381 = vmatpush1.msra.mxu0 0.0
  %382 = vmatprep.subr.mxu0 0.0
  %383 = vmatpush1.msra.mxu0 0.0
  %384 = vmatprep.subr.mxu0 0.0
  %385 = vmatpush1.msra.mxu0 0.0
  %386 = vmatprep.subr.mxu0 0.0
  %387 = vmatpush1.msra.mxu0 0.0
  %388 = vmatprep.subr.mxu0 0.0
  %389 = vmatpush1.msra.mxu0 0.0
  %390 = vmatprep.subr.mxu0 0.0
  %391 = vmatpush1.msra.mxu0 0.0
  %392 = vmatprep.subr.mxu0 0.0
  %393 = vmatpush1.msra.mxu0 0.0
  %394 = vmatprep.subr.mxu0 0.0
  %395 = vmatpush1.msra.mxu0 0.0
  %396 = vmatprep.subr.mxu0 0.0
  %397 = vmatpush1.msra.mxu0 0.0
  %398 = vmatprep.subr.mxu0 0.0
  %399 = vmatpush1.msra.mxu0 0.0
  %400 = vmatprep.subr.mxu0 0.0
  %401 = vmatpush1.msra.mxu0 0.0
  %402 = vmatprep.subr.mxu0 0.0
  %403 = vmatpush1.msra.mxu0 0.0
  %404 = vmatprep.subr.mxu0 0.0
  %405 = vmatpush1.msra.mxu0 0.0
  %406 = vmatprep.subr.mxu0 0.0
  %407 = vmatpush1.msra.mxu0 0.0
  %408 = vmatprep.subr.mxu0 0.0
  %409 = vmatpush1.msra.mxu0 0.0
  %410 = vmatprep.subr.mxu0 0.0
  %411 = vmatpush1.msra.mxu0 0.0
  %412 = vmatprep.subr.mxu0 0.0
  %413 = vmatpush1.msra.mxu0 0.0
  %414 = vmatprep.subr.mxu0 0.0
  %415 = vmatpush1.msra.mxu0 0.0
  %416 = vmatprep.subr.mxu0 0.0
  %417 = vmatpush1.msra.mxu0 0.0
  %418 = vmatprep.subr.mxu0 0.0
  %419 = vmatpush1.msra.mxu0 0.0
  %420 = vmatprep.subr.mxu0 0.0
  %421 = vmatpush1.msra.mxu0 0.0
  %422 = vmatprep.subr.mxu0 0.0
  %423 = vmatpush1.msra.mxu0 0.0
  %424 = vmatprep.subr.mxu0 0.0
  %425 = vmatpush1.msra.mxu0 0.0
  %426 = vmatprep.subr.mxu0 0.0
  %427 = vmatpush1.msra.mxu0 0.0
  %428 = vmatprep.mubr.f32.mxu0 0.0
  %v429 = vand.u32 %v47, 4294901760
  %430 = vmatmul.mubr.f32.gmra.mrb[0].mxu0 %v429
  %v431 = vpop.f32.mrb[0].mxu0
  %v432 = vadd.f32 %v355, %v431
  %v433 = vpop.f32.mrb[0].mxu0
  %434 = vdwg.mxu0
  %435 = vmatprep.subr.mxu0 0.0
  %v436 = vand.u32 %v36, 4294901760
  %437 = vmatpush1.msra.mxu0 %v436
  %438 = vmatprep.subr.mxu0 0.0
  %v439 = vand.u32 %v37, 4294901760
  %440 = vmatpush1.msra.mxu0 %v439
  %441 = vmatprep.subr.mxu0 0.0
  %442 = vmatpush1.msra.mxu0 0.0
  %443 = vmatprep.subr.mxu0 0.0
  %444 = vmatpush1.msra.mxu0 0.0
  %445 = vmatprep.subr.mxu0 0.0
  %446 = vmatpush1.msra.mxu0 0.0
  %447 = vmatprep.subr.mxu0 0.0
  %448 = vmatpush1.msra.mxu0 0.0
  %449 = vmatprep.subr.mxu0 0.0
  %450 = vmatpush1.msra.mxu0 0.0
  %451 = vmatprep.subr.mxu0 0.0
  %452 = vmatpush1.msra.mxu0 0.0
  %453 = vmatprep.subr.mxu0 0.0
  %454 = vmatpush1.msra.mxu0 0.0
  %455 = vmatprep.subr.mxu0 0.0
  %456 = vmatpush1.msra.mxu0 0.0
  %457 = vmatprep.subr.mxu0 0.0
  %458 = vmatpush1.msra.mxu0 0.0
  %459 = vmatprep.subr.mxu0 0.0
  %460 = vmatpush1.msra.mxu0 0.0
  %461 = vmatprep.subr.mxu0 0.0
  %462 = vmatpush1.msra.mxu0 0.0
  %463 = vmatprep.subr.mxu0 0.0
  %464 = vmatpush1.msra.mxu0 0.0
  %465 = vmatprep.subr.mxu0 0.0
  %466 = vmatpush1.msra.mxu0 0.0
  %467 = vmatprep.subr.mxu0 0.0
  %468 = vmatpush1.msra.mxu0 0.0
  %469 = vmatprep.subr.mxu0 0.0
  %470 = vmatpush1.msra.mxu0 0.0
  %471 = vmatprep.subr.mxu0 0.0
  %472 = vmatpush1.msra.mxu0 0.0
  %473 = vmatprep.subr.mxu0 0.0
  %474 = vmatpush1.msra.mxu0 0.0
  %475 = vmatprep.subr.mxu0 0.0
  %476 = vmatpush1.msra.mxu0 0.0
  %477 = vmatprep.subr.mxu0 0.0
  %478 = vmatpush1.msra.mxu0 0.0
  %479 = vmatprep.subr.mxu0 0.0
  %480 = vmatpush1.msra.mxu0 0.0
  %481 = vmatprep.subr.mxu0 0.0
  %482 = vmatpush1.msra.mxu0 0.0
  %483 = vmatprep.subr.mxu0 0.0
  %484 = vmatpush1.msra.mxu0 0.0
  %485 = vmatprep.subr.mxu0 0.0
  %486 = vmatpush1.msra.mxu0 0.0
  %487 = vmatprep.subr.mxu0 0.0
  %488 = vmatpush1.msra.mxu0 0.0
  %489 = vmatprep.subr.mxu0 0.0
  %490 = vmatpush1.msra.mxu0 0.0
  %491 = vmatprep.subr.mxu0 0.0
  %492 = vmatpush1.msra.mxu0 0.0
  %493 = vmatprep.subr.mxu0 0.0
  %494 = vmatpush1.msra.mxu0 0.0
  %495 = vmatprep.subr.mxu0 0.0
  %496 = vmatpush1.msra.mxu0 0.0
  %497 = vmatprep.subr.mxu0 0.0
  %498 = vmatpush1.msra.mxu0 0.0
  %499 = vmatprep.subr.mxu0 0.0
  %500 = vmatpush1.msra.mxu0 0.0
  %501 = vmatprep.mubr.f32.mxu0 0.0
  %v502 = vand.u32 %v47, 4294901760
  %503 = vmatmul.mubr.f32.gmra.mrb[0].mxu0 %v502
  %v504 = vpop.f32.mrb[0].mxu0
  %v505 = vadd.f32 %v432, %v504
  %v506 = vpop.f32.mrb[0].mxu0
  %507 = vdwg.mxu0
  %v508 = vmax.f32 %v505, 0.0
  %v509 = vld [vmem:[%s3] sm:$0xff]
  %v510 = vld [vmem:[%s3 + $0x8] sm:$0xff]
  %v511 = vld [vmem:[%s3 + $0x10] sm:$0xff]
  %v512 = vld [vmem:[%s3 + $0x18] sm:$0xff]
  %v513 = vld [vmem:[%s4] sm:$0x1]
  %v515 = vlaneseq
  %v516 = vshrl.u32 %v515, 7
  %v517 = vsub.s32 0, %v516
  %v518 = vrot.slane %v513, %v517
  %vm520 = vcmask 261120
  %v522 = vsel %vm520, %v508, 0
  %524 = vmatprep.subr.mxu0 0.0
  %v525 = vand.u32 %v509, 4294901760
  %526 = vmatpush1.msra.mxu0 %v525
  %527 = vmatprep.subr.mxu0 0.0
  %v528 = vand.u32 %v510, 4294901760
  %529 = vmatpush1.msra.mxu0 %v528
  %530 = vmatprep.subr.mxu0 0.0
  %v531 = vand.u32 %v511, 4294901760
  %532 = vmatpush1.msra.mxu0 %v531
  %533 = vmatprep.subr.mxu0 0.0
  %v534 = vand.u32 %v512, 4294901760
  %535 = vmatpush1.msra.mxu0 %v534
  %536 = vmatprep.subr.mxu0 0.0
  %537 = vmatpush1.msra.mxu0 0.0
  %538 = vmatprep.subr.mxu0 0.0
  %539 = vmatpush1.msra.mxu0 0.0
  %540 = vmatprep.subr.mxu0 0.0
  %541 = vmatpush1.msra.mxu0 0.0
  %542 = vmatprep.subr.mxu0 0.0
  %543 = vmatpush1.msra.mxu0 0.0
  %544 = vmatprep.subr.mxu0 0.0
  %545 = vmatpush1.msra.mxu0 0.0
  %546 = vmatprep.subr.mxu0 0.0
  %547 = vmatpush1.msra.mxu0 0.0
  %548 = vmatprep.subr.mxu0 0.0
  %549 = vmatpush1.msra.mxu0 0.0
  %550 = vmatprep.subr.mxu0 0.0
  %551 = vmatpush1.msra.mxu0 0.0
  %552 = vmatprep.subr.mxu0 0.0
  %553 = vmatpush1.msra.mxu0 0.0
  %554 = vmatprep.subr.mxu0 0.0
  %555 = vmatpush1.msra.mxu0 0.0
  %556 = vmatprep.subr.mxu0 0.0
  %557 = vmatpush1.msra.mxu0 0.0
  %558 = vmatprep.subr.mxu0 0.0
  %559 = vmatpush1.msra.mxu0 0.0
  %560 = vmatprep.subr.mxu0 0.0
  %561 = vmatpush1.msra.mxu0 0.0
  %562 = vmatprep.subr.mxu0 0.0
  %563 = vmatpush1.msra.mxu0 0.0
  %564 = vmatprep.subr.mxu0 0.0
  %565 = vmatpush1.msra.mxu0 0.0
  %566 = vmatprep.subr.mxu0 0.0
  %567 = vmatpush1.msra.mxu0 0.0
  %568 = vmatprep.subr.mxu0 0.0
  %569 = vmatpush1.msra.mxu0 0.0
  %570 = vmatprep.subr.mxu0 0.0
  %571 = vmatpush1.msra.mxu0 0.0
  %572 = vmatprep.subr.mxu0 0.0
  %573 = vmatpush1.msra.mxu0 0.0
  %574 = vmatprep.subr.mxu0 0.0
  %575 = vmatpush1.msra.mxu0 0.0
  %576 = vmatprep.subr.mxu0 0.0
  %577 = vmatpush1.msra.mxu0 0.0
  %578 = vmatprep.subr.mxu0 0.0
  %579 = vmatpush1.msra.mxu0 0.0
  %580 = vmatprep.subr.mxu0 0.0
  %581 = vmatpush1.msra.mxu0 0.0
  %582 = vmatprep.subr.mxu0 0.0
  %583 = vmatpush1.msra.mxu0 0.0
  %584 = vmatprep.subr.mxu0 0.0
  %585 = vmatpush1.msra.mxu0 0.0
  %586 = vmatprep.subr.mxu0 0.0
  %587 = vmatpush1.msra.mxu0 0.0
  %588 = vmatprep.subr.mxu0 0.0
  %589 = vmatpush1.msra.mxu0 0.0
  %590 = vmatprep.subr.mxu0 0.0
  %591 = vmatpush1.msra.mxu0 0.0
  %592 = vmatprep.mubr.f32.mxu0 0.0
  %v593 = vand.u32 %v522, 4294901760
  %v594 = vsub.f32 %v522, %v593
  %v595 = vand.u32 %v594, 4294901760
  %v596 = vsub.f32 %v594, %v595
  %v597 = vand.u32 %v596, 4294901760
  %598 = vmatmul.mubr.f32.gmra.mrb[0].mxu0 %v597
  %v599 = vpop.f32.mrb[0].mxu0
  %v600 = vadd.f32 %v518, %v599
  %v601 = vpop.f32.mrb[0].mxu0
  %602 = vdwg.mxu0
  %603 = vmatprep.subr.mxu0 0.0
  %v604 = vand.u32 %v509, 4294901760
  %v605 = vsub.f32 %v509, %v604
  %v606 = vand.u32 %v605, 4294901760
  %v607 = vsub.f32 %v605, %v606
  %v608 = vand.u32 %v607, 4294901760
  %609 = vmatpush1.msra.mxu0 %v608
  %610 = vmatprep.subr.mxu0 0.0
  %v611 = vand.u32 %v510, 4294901760
  %v612 = vsub.f32 %v510, %v611
  %v613 = vand.u32 %v612, 4294901760
  %v614 = vsub.f32 %v612, %v613
  %v615 = vand.u32 %v614, 4294901760
  %616 = vmatpush1.msra.mxu0 %v615
  %617 = vmatprep.subr.mxu0 0.0
  %v618 = vand.u32 %v511, 4294901760
  %v619 = vsub.f32 %v511, %v618
  %v620 = vand.u32 %v619, 4294901760
  %v621 = vsub.f32 %v619, %v620
  %v622 = vand.u32 %v621, 4294901760
  %623 = vmatpush1.msra.mxu0 %v622
  %624 = vmatprep.subr.mxu0 0.0
  %v625 = vand.u32 %v512, 4294901760
  %v626 = vsub.f32 %v512, %v625
  %v627 = vand.u32 %v626, 4294901760
  %v628 = vsub.f32 %v626, %v627
  %v629 = vand.u32 %v628, 4294901760
  %630 = vmatpush1.msra.mxu0 %v629
  %631 = vmatprep.subr.mxu0 0.0
  %632 = vmatpush1.msra.mxu0 0.0
  %633 = vmatprep.subr.mxu0 0.0
  %634 = vmatpush1.msra.mxu0 0.0
  %635 = vmatprep.subr.mxu0 0.0
  %636 = vmatpush1.msra.mxu0 0.0
  %637 = vmatprep.subr.mxu0 0.0
  %638 = vmatpush1.msra.mxu0 0.0
  %639 = vmatprep.subr.mxu0 0.0
  %640 = vmatpush1.msra.mxu0 0.0
  %641 = vmatprep.subr.mxu0 0.0
  %642 = vmatpush1.msra.mxu0 0.0
  %643 = vmatprep.subr.mxu0 0.0
  %644 = vmatpush1.msra.mxu0 0.0
  %645 = vmatprep.subr.mxu0 0.0
  %646 = vmatpush1.msra.mxu0 0.0
  %647 = vmatprep.subr.mxu0 0.0
  %648 = vmatpush1.msra.mxu0 0.0
  %649 = vmatprep.subr.mxu0 0.0
  %650 = vmatpush1.msra.mxu0 0.0
  %651 = vmatprep.subr.mxu0 0.0
  %652 = vmatpush1.msra.mxu0 0.0
  %653 = vmatprep.subr.mxu0 0.0
  %654 = vmatpush1.msra.mxu0 0.0
  %655 = vmatprep.subr.mxu0 0.0
  %656 = vmatpush1.msra.mxu0 0.0
  %657 = vmatprep.subr.mxu0 0.0
  %658 = vmatpush1.msra.mxu0 0.0
  %659 = vmatprep.subr.mxu0 0.0
  %660 = vmatpush1.msra.mxu0 0.0
  %661 = vmatprep.subr.mxu0 0.0
  %662 = vmatpush1.msra.mxu0 0.0
  %663 = vmatprep.subr.mxu0 0.0
  %664 = vmatpush1.msra.mxu0 0.0
  %665 = vmatprep.subr.mxu0 0.0
  %666 = vmatpush1.msra.mxu0 0.0
  %667 = vmatprep.subr.mxu0 0.0
  %668 = vmatpush1.msra.mxu0 0.0
  %669 = vmatprep.subr.mxu0 0.0
  %670 = vmatpush1.msra.mxu0 0.0
  %671 = vmatprep.subr.mxu0 0.0
  %672 = vmatpush1.msra.mxu0 0.0
  %673 = vmatprep.subr.mxu0 0.0
  %674 = vmatpush1.msra.mxu0 0.0
  %675 = vmatprep.subr.mxu0 0.0
  %676 = vmatpush1.msra.mxu0 0.0
  %677 = vmatprep.subr.mxu0 0.0
  %678 = vmatpush1.msra.mxu0 0.0
  %679 = vmatprep.subr.mxu0 0.0
  %680 = vmatpush1.msra.mxu0 0.0
  %681 = vmatprep.subr.mxu0 0.0
  %682 = vmatpush1.msra.mxu0 0.0
  %683 = vmatprep.subr.mxu0 0.0
  %684 = vmatpush1.msra.mxu0 0.0
  %685 = vmatprep.subr.mxu0 0.0
  %686 = vmatpush1.msra.mxu0 0.0
  %687 = vmatprep.mubr.f32.mxu0 0.0
  %v688 = vand.u32 %v522, 4294901760
  %689 = vmatmul.mubr.f32.gmra.mrb[0].mxu0 %v688
  %v690 = vpop.f32.mrb[0].mxu0
  %v691 = vadd.f32 %v600, %v690
  %v692 = vpop.f32.mrb[0].mxu0
  %693 = vdwg.mxu0
  %694 = vmatprep.subr.mxu0 0.0
  %v695 = vand.u32 %v509, 4294901760
  %v696 = vsub.f32 %v509, %v695
  %697 = vmatpush1.msra.mxu0 %v696
  %698 = vmatprep.subr.mxu0 0.0
  %v699 = vand.u32 %v510, 4294901760
  %v700 = vsub.f32 %v510, %v699
  %701 = vmatpush1.msra.mxu0 %v700
  %702 = vmatprep.subr.mxu0 0.0
  %v703 = vand.u32 %v511, 4294901760
  %v704 = vsub.f32 %v511, %v703
  %705 = vmatpush1.msra.mxu0 %v704
  %706 = vmatprep.subr.mxu0 0.0
  %v707 = vand.u32 %v512, 4294901760
  %v708 = vsub.f32 %v512, %v707
  %709 = vmatpush1.msra.mxu0 %v708
  %710 = vmatprep.subr.mxu0 0.0
  %711 = vmatpush1.msra.mxu0 0.0
  %712 = vmatprep.subr.mxu0 0.0
  %713 = vmatpush1.msra.mxu0 0.0
  %714 = vmatprep.subr.mxu0 0.0
  %715 = vmatpush1.msra.mxu0 0.0
  %716 = vmatprep.subr.mxu0 0.0
  %717 = vmatpush1.msra.mxu0 0.0
  %718 = vmatprep.subr.mxu0 0.0
  %719 = vmatpush1.msra.mxu0 0.0
  %720 = vmatprep.subr.mxu0 0.0
  %721 = vmatpush1.msra.mxu0 0.0
  %722 = vmatprep.subr.mxu0 0.0
  %723 = vmatpush1.msra.mxu0 0.0
  %724 = vmatprep.subr.mxu0 0.0
  %725 = vmatpush1.msra.mxu0 0.0
  %726 = vmatprep.subr.mxu0 0.0
  %727 = vmatpush1.msra.mxu0 0.0
  %728 = vmatprep.subr.mxu0 0.0
  %729 = vmatpush1.msra.mxu0 0.0
  %730 = vmatprep.subr.mxu0 0.0
  %731 = vmatpush1.msra.mxu0 0.0
  %732 = vmatprep.subr.mxu0 0.0
  %733 = vmatpush1.msra.mxu0 0.0
  %734 = vmatprep.subr.mxu0 0.0
  %735 = vmatpush1.msra.mxu0 0.0
  %736 = vmatprep.subr.mxu0 0.0
  %737 = vmatpush1.msra.mxu0 0.0
  %738 = vmatprep.subr.mxu0 0.0
  %739 = vmatpush1.msra.mxu0 0.0
  %740 = vmatprep.subr.mxu0 0.0
  %741 = vmatpush1.msra.mxu0 0.0
  %742 = vmatprep.subr.mxu0 0.0
  %743 = vmatpush1.msra.mxu0 0.0
  %744 = vmatprep.subr.mxu0 0.0
  %745 = vmatpush1.msra.mxu0 0.0
  %746 = vmatprep.subr.mxu0 0.0
  %747 = vmatpush1.msra.mxu0 0.0
  %748 = vmatprep.subr.mxu0 0.0
  %749 = vmatpush1.msra.mxu0 0.0
  %750 = vmatprep.subr.mxu0 0.0
  %751 = vmatpush1.msra.mxu0 0.0
  %752 = vmatprep.subr.mxu0 0.0
  %753 = vmatpush1.msra.mxu0 0.0
  %754 = vmatprep.subr.mxu0 0.0
  %755 = vmatpush1.msra.mxu0 0.0
  %756 = vmatprep.subr.mxu0 0.0
  %757 = vmatpush1.msra.mxu0 0.0
  %758 = vmatprep.subr.mxu0 0.0
  %759 = vmatpush1.msra.mxu0 0.0
  %760 = vmatprep.subr.mxu0 0.0
  %761 = vmatpush1.msra.mxu0 0.0
  %762 = vmatprep.subr.mxu0 0.0
  %763 = vmatpush1.msra.mxu0 0.0
  %764 = vmatprep.subr.mxu0 0.0
  %765 = vmatpush1.msra.mxu0 0.0
  %766 = vmatprep.mubr.f32.mxu0 0.0
  %v767 = vand.u32 %v522, 4294901760
  %v768 = vsub.f32 %v522, %v767
  %769 = vmatmul.mubr.f32.gmra.mrb[0].mxu0 %v768
  %v770 = vpop.f32.mrb[0].mxu0
  %v771 = vadd.f32 %v691, %v770
  %v772 = vpop.f32.mrb[0].mxu0
  %773 = vdwg.mxu0
  %774 = vmatprep.subr.mxu0 0.0
  %v775 = vand.u32 %v509, 4294901760
  %776 = vmatpush1.msra.mxu0 %v775
  %777 = vmatprep.subr.mxu0 0.0
  %v778 = vand.u32 %v510, 4294901760
  %779 = vmatpush1.msra.mxu0 %v778
  %780 = vmatprep.subr.mxu0 0.0
  %v781 = vand.u32 %v511, 4294901760
  %782 = vmatpush1.msra.mxu0 %v781
  %783 = vmatprep.subr.mxu0 0.0
  %v784 = vand.u32 %v512, 4294901760
  %785 = vmatpush1.msra.mxu0 %v784
  %786 = vmatprep.subr.mxu0 0.0
  %787 = vmatpush1.msra.mxu0 0.0
  %788 = vmatprep.subr.mxu0 0.0
  %789 = vmatpush1.msra.mxu0 0.0
  %790 = vmatprep.subr.mxu0 0.0
  %791 = vmatpush1.msra.mxu0 0.0
  %792 = vmatprep.subr.mxu0 0.0
  %793 = vmatpush1.msra.mxu0 0.0
  %794 = vmatprep.subr.mxu0 0.0
  %795 = vmatpush1.msra.mxu0 0.0
  %796 = vmatprep.subr.mxu0 0.0
  %797 = vmatpush1.msra.mxu0 0.0
  %798 = vmatprep.subr.mxu0 0.0
  %799 = vmatpush1.msra.mxu0 0.0
  %800 = vmatprep.subr.mxu0 0.0
  %801 = vmatpush1.msra.mxu0 0.0
  %802 = vmatprep.subr.mxu0 0.0
  %803 = vmatpush1.msra.mxu0 0.0
  %804 = vmatprep.subr.mxu0 0.0
  %805 = vmatpush1.msra.mxu0 0.0
  %806 = vmatprep.subr.mxu0 0.0
  %807 = vmatpush1.msra.mxu0 0.0
  %808 = vmatprep.subr.mxu0 0.0
  %809 = vmatpush1.msra.mxu0 0.0
  %810 = vmatprep.subr.mxu0 0.0
  %811 = vmatpush1.msra.mxu0 0.0
  %812 = vmatprep.subr.mxu0 0.0
  %813 = vmatpush1.msra.mxu0 0.0
  %814 = vmatprep.subr.mxu0 0.0
  %815 = vmatpush1.msra.mxu0 0.0
  %816 = vmatprep.subr.mxu0 0.0
  %817 = vmatpush1.msra.mxu0 0.0
  %818 = vmatprep.subr.mxu0 0.0
  %819 = vmatpush1.msra.mxu0 0.0
  %820 = vmatprep.subr.mxu0 0.0
  %821 = vmatpush1.msra.mxu0 0.0
  %822 = vmatprep.subr.mxu0 0.0
  %823 = vmatpush1.msra.mxu0 0.0
  %824 = vmatprep.subr.mxu0 0.0
  %825 = vmatpush1.msra.mxu0 0.0
  %826 = vmatprep.subr.mxu0 0.0
  %827 = vmatpush1.msra.mxu0 0.0
  %828 = vmatprep.subr.mxu0 0.0
  %829 = vmatpush1.msra.mxu0 0.0
  %830 = vmatprep.subr.mxu0 0.0
  %831 = vmatpush1.msra.mxu0 0.0
  %832 = vmatprep.subr.mxu0 0.0
  %833 = vmatpush1.msra.mxu0 0.0
  %834 = vmatprep.subr.mxu0 0.0
  %835 = vmatpush1.msra.mxu0 0.0
  %836 = vmatprep.subr.mxu0 0.0
  %837 = vmatpush1.msra.mxu0 0.0
  %838 = vmatprep.subr.mxu0 0.0
  %839 = vmatpush1.msra.mxu0 0.0
  %840 = vmatprep.subr.mxu0 0.0
  %841 = vmatpush1.msra.mxu0 0.0
  %842 = vmatprep.mubr.f32.mxu0 0.0
  %v843 = vand.u32 %v522, 4294901760
  %v844 = vsub.f32 %v522, %v843
  %v845 = vand.u32 %v844, 4294901760
  %846 = vmatmul.mubr.f32.gmra.mrb[0].mxu0 %v845
  %v847 = vpop.f32.mrb[0].mxu0
  %v848 = vadd.f32 %v771, %v847
  %v849 = vpop.f32.mrb[0].mxu0
  %850 = vdwg.mxu0
  %851 = vmatprep.subr.mxu0 0.0
  %v852 = vand.u32 %v509, 4294901760
  %v853 = vsub.f32 %v509, %v852
  %v854 = vand.u32 %v853, 4294901760
  %855 = vmatpush1.msra.mxu0 %v854
  %856 = vmatprep.subr.mxu0 0.0
  %v857 = vand.u32 %v510, 4294901760
  %v858 = vsub.f32 %v510, %v857
  %v859 = vand.u32 %v858, 4294901760
  %860 = vmatpush1.msra.mxu0 %v859
  %861 = vmatprep.subr.mxu0 0.0
  %v862 = vand.u32 %v511, 4294901760
  %v863 = vsub.f32 %v511, %v862
  %v864 = vand.u32 %v863, 4294901760
  %865 = vmatpush1.msra.mxu0 %v864
  %866 = vmatprep.subr.mxu0 0.0
  %v867 = vand.u32 %v512, 4294901760
  %v868 = vsub.f32 %v512, %v867
  %v869 = vand.u32 %v868, 4294901760
  %870 = vmatpush1.msra.mxu0 %v869
  %871 = vmatprep.subr.mxu0 0.0
  %872 = vmatpush1.msra.mxu0 0.0
  %873 = vmatprep.subr.mxu0 0.0
  %874 = vmatpush1.msra.mxu0 0.0
  %875 = vmatprep.subr.mxu0 0.0
  %876 = vmatpush1.msra.mxu0 0.0
  %877 = vmatprep.subr.mxu0 0.0
  %878 = vmatpush1.msra.mxu0 0.0
  %879 = vmatprep.subr.mxu0 0.0
  %880 = vmatpush1.msra.mxu0 0.0
  %881 = vmatprep.subr.mxu0 0.0
  %882 = vmatpush1.msra.mxu0 0.0
  %883 = vmatprep.subr.mxu0 0.0
  %884 = vmatpush1.msra.mxu0 0.0
  %885 = vmatprep.subr.mxu0 0.0
  %886 = vmatpush1.msra.mxu0 0.0
  %887 = vmatprep.subr.mxu0 0.0
  %888 = vmatpush1.msra.mxu0 0.0
  %889 = vmatprep.subr.mxu0 0.0
  %890 = vmatpush1.msra.mxu0 0.0
  %891 = vmatprep.subr.mxu0 0.0
  %892 = vmatpush1.msra.mxu0 0.0
  %893 = vmatprep.subr.mxu0 0.0
  %894 = vmatpush1.msra.mxu0 0.0
  %895 = vmatprep.subr.mxu0 0.0
  %896 = vmatpush1.msra.mxu0 0.0
  %897 = vmatprep.subr.mxu0 0.0
  %898 = vmatpush1.msra.mxu0 0.0
  %899 = vmatprep.subr.mxu0 0.0
  %900 = vmatpush1.msra.mxu0 0.0
  %901 = vmatprep.subr.mxu0 0.0
  %902 = vmatpush1.msra.mxu0 0.0
  %903 = vmatprep.subr.mxu0 0.0
  %904 = vmatpush1.msra.mxu0 0.0
  %905 = vmatprep.subr.mxu0 0.0
  %906 = vmatpush1.msra.mxu0 0.0
  %907 = vmatprep.subr.mxu0 0.0
  %908 = vmatpush1.msra.mxu0 0.0
  %909 = vmatprep.subr.mxu0 0.0
  %910 = vmatpush1.msra.mxu0 0.0
  %911 = vmatprep.subr.mxu0 0.0
  %912 = vmatpush1.msra.mxu0 0.0
  %913 = vmatprep.subr.mxu0 0.0
  %914 = vmatpush1.msra.mxu0 0.0
  %915 = vmatprep.subr.mxu0 0.0
  %916 = vmatpush1.msra.mxu0 0.0
  %917 = vmatprep.subr.mxu0 0.0
  %918 = vmatpush1.msra.mxu0 0.0
  %919 = vmatprep.subr.mxu0 0.0
  %920 = vmatpush1.msra.mxu0 0.0
  %921 = vmatprep.subr.mxu0 0.0
  %922 = vmatpush1.msra.mxu0 0.0
  %923 = vmatprep.subr.mxu0 0.0
  %924 = vmatpush1.msra.mxu0 0.0
  %925 = vmatprep.subr.mxu0 0.0
  %926 = vmatpush1.msra.mxu0 0.0
  %927 = vmatprep.mubr.f32.mxu0 0.0
  %v928 = vand.u32 %v522, 4294901760
  %929 = vmatmul.mubr.f32.gmra.mrb[0].mxu0 %v928
  %v930 = vpop.f32.mrb[0].mxu0
  %v931 = vadd.f32 %v848, %v930
  %v932 = vpop.f32.mrb[0].mxu0
  %933 = vdwg.mxu0
  %934 = vmatprep.subr.mxu0 0.0
  %v935 = vand.u32 %v509, 4294901760
  %936 = vmatpush1.msra.mxu0 %v935
  %937 = vmatprep.subr.mxu0 0.0
  %v938 = vand.u32 %v510, 4294901760
  %939 = vmatpush1.msra.mxu0 %v938
  %940 = vmatprep.subr.mxu0 0.0
  %v941 = vand.u32 %v511, 4294901760
  %942 = vmatpush1.msra.mxu0 %v941
  %943 = vmatprep.subr.mxu0 0.0
  %v944 = vand.u32 %v512, 4294901760
  %945 = vmatpush1.msra.mxu0 %v944
  %946 = vmatprep.subr.mxu0 0.0
  %947 = vmatpush1.msra.mxu0 0.0
  %948 = vmatprep.subr.mxu0 0.0
  %949 = vmatpush1.msra.mxu0 0.0
  %950 = vmatprep.subr.mxu0 0.0
  %951 = vmatpush1.msra.mxu0 0.0
  %952 = vmatprep.subr.mxu0 0.0
  %953 = vmatpush1.msra.mxu0 0.0
  %954 = vmatprep.subr.mxu0 0.0
  %955 = vmatpush1.msra.mxu0 0.0
  %956 = vmatprep.subr.mxu0 0.0
  %957 = vmatpush1.msra.mxu0 0.0
  %958 = vmatprep.subr.mxu0 0.0
  %959 = vmatpush1.msra.mxu0 0.0
  %960 = vmatprep.subr.mxu0 0.0
  %961 = vmatpush1.msra.mxu0 0.0
  %962 = vmatprep.subr.mxu0 0.0
  %963 = vmatpush1.msra.mxu0 0.0
  %964 = vmatprep.subr.mxu0 0.0
  %965 = vmatpush1.msra.mxu0 0.0
  %966 = vmatprep.subr.mxu0 0.0
  %967 = vmatpush1.msra.mxu0 0.0
  %968 = vmatprep.subr.mxu0 0.0
  %969 = vmatpush1.msra.mxu0 0.0
  %970 = vmatprep.subr.mxu0 0.0
  %971 = vmatpush1.msra.mxu0 0.0
  %972 = vmatprep.subr.mxu0 0.0
  %973 = vmatpush1.msra.mxu0 0.0
  %974 = vmatprep.subr.mxu0 0.0
  %975 = vmatpush1.msra.mxu0 0.0
  %976 = vmatprep.subr.mxu0 0.0
  %977 = vmatpush1.msra.mxu0 0.0
  %978 = vmatprep.subr.mxu0 0.0
  %979 = vmatpush1.msra.mxu0 0.0
  %980 = vmatprep.subr.mxu0 0.0
  %981 = vmatpush1.msra.mxu0 0.0
  %982 = vmatprep.subr.mxu0 0.0
  %983 = vmatpush1.msra.mxu0 0.0
  %984 = vmatprep.subr.mxu0 0.0
  %985 = vmatpush1.msra.mxu0 0.0
  %986 = vmatprep.subr.mxu0 0.0
  %987 = vmatpush1.msra.mxu0 0.0
  %988 = vmatprep.subr.mxu0 0.0
  %989 = vmatpush1.msra.mxu0 0.0
  %990 = vmatprep.subr.mxu0 0.0
  %991 = vmatpush1.msra.mxu0 0.0
  %992 = vmatprep.subr.mxu0 0.0
  %993 = vmatpush1.msra.mxu0 0.0
  %994 = vmatprep.subr.mxu0 0.0
  %995 = vmatpush1.msra.mxu0 0.0
  %996 = vmatprep.subr.mxu0 0.0
  %997 = vmatpush1.msra.mxu0 0.0
  %998 = vmatprep.subr.mxu0 0.0
  %999 = vmatpush1.msra.mxu0 0.0
  %1000 = vmatprep.subr.mxu0 0.0
  %1001 = vmatpush1.msra.mxu0 0.0
  %1002 = vmatprep.mubr.f32.mxu0 0.0
  %v1003 = vand.u32 %v522, 4294901760
  %1004 = vmatmul.mubr.f32.gmra.mrb[0].mxu0 %v1003
  %v1005 = vpop.f32.mrb[0].mxu0
  %v1006 = vadd.f32 %v931, %v1005
  %v1007 = vpop.f32.mrb[0].mxu0
  %1008 = vdwg.mxu0
  %v1009 = vmax.f32 %v1006, 0.0
  %v1010 = vld [vmem:[%s5] sm:$0xff]
  %v1011 = vld [vmem:[%s5 + $0x8] sm:$0xff]
  %v1012 = vld [vmem:[%s5 + $0x10] sm:$0xff]
  %v1013 = vld [vmem:[%s5 + $0x18] sm:$0xff]
  %v1014 = vld [vmem:[%s5 + $0x20] sm:$0xff]
  %v1015 = vld [vmem:[%s5 + $0x28] sm:$0xff]
  %v1016 = vld [vmem:[%s5 + $0x30] sm:$0xff]
  %v1017 = vld [vmem:[%s5 + $0x38] sm:$0xff]
  %v1018 = vld [vmem:[%s6] sm:$0x1]
  %v1020 = vlaneseq
  %v1021 = vshrl.u32 %v1020, 7
  %v1022 = vsub.s32 0, %v1021
  %v1023 = vrot.slane %v1018, %v1022
  %vm1025 = vcmask 523264
  %v1027 = vsel %vm1025, %v1009, 0
  %1029 = vmatprep.subr.mxu0 0.0
  %v1030 = vand.u32 %v1010, 4294901760
  %1031 = vmatpush1.msra.mxu0 %v1030
  %1032 = vmatprep.subr.mxu0 0.0
  %v1033 = vand.u32 %v1011, 4294901760
  %1034 = vmatpush1.msra.mxu0 %v1033
  %1035 = vmatprep.subr.mxu0 0.0
  %v1036 = vand.u32 %v1012, 4294901760
  %1037 = vmatpush1.msra.mxu0 %v1036
  %1038 = vmatprep.subr.mxu0 0.0
  %v1039 = vand.u32 %v1013, 4294901760
  %1040 = vmatpush1.msra.mxu0 %v1039
  %1041 = vmatprep.subr.mxu0 0.0
  %v1042 = vand.u32 %v1014, 4294901760
  %1043 = vmatpush1.msra.mxu0 %v1042
  %1044 = vmatprep.subr.mxu0 0.0
  %v1045 = vand.u32 %v1015, 4294901760
  %1046 = vmatpush1.msra.mxu0 %v1045
  %1047 = vmatprep.subr.mxu0 0.0
  %v1048 = vand.u32 %v1016, 4294901760
  %1049 = vmatpush1.msra.mxu0 %v1048
  %1050 = vmatprep.subr.mxu0 0.0
  %v1051 = vand.u32 %v1017, 4294901760
  %1052 = vmatpush1.msra.mxu0 %v1051
  %1053 = vmatprep.subr.mxu0 0.0
  %1054 = vmatpush1.msra.mxu0 0.0
  %1055 = vmatprep.subr.mxu0 0.0
  %1056 = vmatpush1.msra.mxu0 0.0
  %1057 = vmatprep.subr.mxu0 0.0
  %1058 = vmatpush1.msra.mxu0 0.0
  %1059 = vmatprep.subr.mxu0 0.0
  %1060 = vmatpush1.msra.mxu0 0.0
  %1061 = vmatprep.subr.mxu0 0.0
  %1062 = vmatpush1.msra.mxu0 0.0
  %1063 = vmatprep.subr.mxu0 0.0
  %1064 = vmatpush1.msra.mxu0 0.0
  %1065 = vmatprep.subr.mxu0 0.0
  %1066 = vmatpush1.msra.mxu0 0.0
  %1067 = vmatprep.subr.mxu0 0.0
  %1068 = vmatpush1.msra.mxu0 0.0
  %1069 = vmatprep.subr.mxu0 0.0
  %1070 = vmatpush1.msra.mxu0 0.0
  %1071 = vmatprep.subr.mxu0 0.0
  %1072 = vmatpush1.msra.mxu0 0.0
  %1073 = vmatprep.subr.mxu0 0.0
  %1074 = vmatpush1.msra.mxu0 0.0
  %1075 = vmatprep.subr.mxu0 0.0
  %1076 = vmatpush1.msra.mxu0 0.0
  %1077 = vmatprep.subr.mxu0 0.0
  %1078 = vmatpush1.msra.mxu0 0.0
  %1079 = vmatprep.subr.mxu0 0.0
  %1080 = vmatpush1.msra.mxu0 0.0
  %1081 = vmatprep.subr.mxu0 0.0
  %1082 = vmatpush1.msra.mxu0 0.0
  %1083 = vmatprep.subr.mxu0 0.0
  %1084 = vmatpush1.msra.mxu0 0.0
  %1085 = vmatprep.subr.mxu0 0.0
  %1086 = vmatpush1.msra.mxu0 0.0
  %1087 = vmatprep.subr.mxu0 0.0
  %1088 = vmatpush1.msra.mxu0 0.0
  %1089 = vmatprep.subr.mxu0 0.0
  %1090 = vmatpush1.msra.mxu0 0.0
  %1091 = vmatprep.subr.mxu0 0.0
  %1092 = vmatpush1.msra.mxu0 0.0
  %1093 = vmatprep.subr.mxu0 0.0
  %1094 = vmatpush1.msra.mxu0 0.0
  %1095 = vmatprep.subr.mxu0 0.0
  %1096 = vmatpush1.msra.mxu0 0.0
  %1097 = vmatprep.subr.mxu0 0.0
  %1098 = vmatpush1.msra.mxu0 0.0
  %1099 = vmatprep.subr.mxu0 0.0
  %1100 = vmatpush1.msra.mxu0 0.0
  %1101 = vmatprep.mubr.f32.mxu0 0.0
  %v1102 = vand.u32 %v1027, 4294901760
  %v1103 = vsub.f32 %v1027, %v1102
  %v1104 = vand.u32 %v1103, 4294901760
  %v1105 = vsub.f32 %v1103, %v1104
  %v1106 = vand.u32 %v1105, 4294901760
  %1107 = vmatmul.mubr.f32.gmra.mrb[0].mxu0 %v1106
  %v1108 = vpop.f32.mrb[0].mxu0
  %v1109 = vadd.f32 %v1023, %v1108
  %v1110 = vpop.f32.mrb[0].mxu0
  %1111 = vdwg.mxu0
  %1112 = vmatprep.subr.mxu0 0.0
  %v1113 = vand.u32 %v1010, 4294901760
  %v1114 = vsub.f32 %v1010, %v1113
  %v1115 = vand.u32 %v1114, 4294901760
  %v1116 = vsub.f32 %v1114, %v1115
  %v1117 = vand.u32 %v1116, 4294901760
  %1118 = vmatpush1.msra.mxu0 %v1117
  %1119 = vmatprep.subr.mxu0 0.0
  %v1120 = vand.u32 %v1011, 4294901760
  %v1121 = vsub.f32 %v1011, %v1120
  %v1122 = vand.u32 %v1121, 4294901760
  %v1123 = vsub.f32 %v1121, %v1122
  %v1124 = vand.u32 %v1123, 4294901760
  %1125 = vmatpush1.msra.mxu0 %v1124
  %1126 = vmatprep.subr.mxu0 0.0
  %v1127 = vand.u32 %v1012, 4294901760
  %v1128 = vsub.f32 %v1012, %v1127
  %v1129 = vand.u32 %v1128, 4294901760
  %v1130 = vsub.f32 %v1128, %v1129
  %v1131 = vand.u32 %v1130, 4294901760
  %1132 = vmatpush1.msra.mxu0 %v1131
  %1133 = vmatprep.subr.mxu0 0.0
  %v1134 = vand.u32 %v1013, 4294901760
  %v1135 = vsub.f32 %v1013, %v1134
  %v1136 = vand.u32 %v1135, 4294901760
  %v1137 = vsub.f32 %v1135, %v1136
  %v1138 = vand.u32 %v1137, 4294901760
  %1139 = vmatpush1.msra.mxu0 %v1138
  %1140 = vmatprep.subr.mxu0 0.0
  %v1141 = vand.u32 %v1014, 4294901760
  %v1142 = vsub.f32 %v1014, %v1141
  %v1143 = vand.u32 %v1142, 4294901760
  %v1144 = vsub.f32 %v1142, %v1143
  %v1145 = vand.u32 %v1144, 4294901760
  %1146 = vmatpush1.msra.mxu0 %v1145
  %1147 = vmatprep.subr.mxu0 0.0
  %v1148 = vand.u32 %v1015, 4294901760
  %v1149 = vsub.f32 %v1015, %v1148
  %v1150 = vand.u32 %v1149, 4294901760
  %v1151 = vsub.f32 %v1149, %v1150
  %v1152 = vand.u32 %v1151, 4294901760
  %1153 = vmatpush1.msra.mxu0 %v1152
  %1154 = vmatprep.subr.mxu0 0.0
  %v1155 = vand.u32 %v1016, 4294901760
  %v1156 = vsub.f32 %v1016, %v1155
  %v1157 = vand.u32 %v1156, 4294901760
  %v1158 = vsub.f32 %v1156, %v1157
  %v1159 = vand.u32 %v1158, 4294901760
  %1160 = vmatpush1.msra.mxu0 %v1159
  %1161 = vmatprep.subr.mxu0 0.0
  %v1162 = vand.u32 %v1017, 4294901760
  %v1163 = vsub.f32 %v1017, %v1162
  %v1164 = vand.u32 %v1163, 4294901760
  %v1165 = vsub.f32 %v1163, %v1164
  %v1166 = vand.u32 %v1165, 4294901760
  %1167 = vmatpush1.msra.mxu0 %v1166
  %1168 = vmatprep.subr.mxu0 0.0
  %1169 = vmatpush1.msra.mxu0 0.0
  %1170 = vmatprep.subr.mxu0 0.0
  %1171 = vmatpush1.msra.mxu0 0.0
  %1172 = vmatprep.subr.mxu0 0.0
  %1173 = vmatpush1.msra.mxu0 0.0
  %1174 = vmatprep.subr.mxu0 0.0
  %1175 = vmatpush1.msra.mxu0 0.0
  %1176 = vmatprep.subr.mxu0 0.0
  %1177 = vmatpush1.msra.mxu0 0.0
  %1178 = vmatprep.subr.mxu0 0.0
  %1179 = vmatpush1.msra.mxu0 0.0
  %1180 = vmatprep.subr.mxu0 0.0
  %1181 = vmatpush1.msra.mxu0 0.0
  %1182 = vmatprep.subr.mxu0 0.0
  %1183 = vmatpush1.msra.mxu0 0.0
  %1184 = vmatprep.subr.mxu0 0.0
  %1185 = vmatpush1.msra.mxu0 0.0
  %1186 = vmatprep.subr.mxu0 0.0
  %1187 = vmatpush1.msra.mxu0 0.0
  %1188 = vmatprep.subr.mxu0 0.0
  %1189 = vmatpush1.msra.mxu0 0.0
  %1190 = vmatprep.subr.mxu0 0.0
  %1191 = vmatpush1.msra.mxu0 0.0
  %1192 = vmatprep.subr.mxu0 0.0
  %1193 = vmatpush1.msra.mxu0 0.0
  %1194 = vmatprep.subr.mxu0 0.0
  %1195 = vmatpush1.msra.mxu0 0.0
  %1196 = vmatprep.subr.mxu0 0.0
  %1197 = vmatpush1.msra.mxu0 0.0
  %1198 = vmatprep.subr.mxu0 0.0
  %1199 = vmatpush1.msra.mxu0 0.0
  %1200 = vmatprep.subr.mxu0 0.0
  %1201 = vmatpush1.msra.mxu0 0.0
  %1202 = vmatprep.subr.mxu0 0.0
  %1203 = vmatpush1.msra.mxu0 0.0
  %1204 = vmatprep.subr.mxu0 0.0
  %1205 = vmatpush1.msra.mxu0 0.0
  %1206 = vmatprep.subr.mxu0 0.0
  %1207 = vmatpush1.msra.mxu0 0.0
  %1208 = vmatprep.subr.mxu0 0.0
  %1209 = vmatpush1.msra.mxu0 0.0
  %1210 = vmatprep.subr.mxu0 0.0
  %1211 = vmatpush1.msra.mxu0 0.0
  %1212 = vmatprep.subr.mxu0 0.0
  %1213 = vmatpush1.msra.mxu0 0.0
  %1214 = vmatprep.subr.mxu0 0.0
  %1215 = vmatpush1.msra.mxu0 0.0
  %1216 = vmatprep.mubr.f32.mxu0 0.0
  %v1217 = vand.u32 %v1027, 4294901760
  %1218 = vmatmul.mubr.f32.gmra.mrb[0].mxu0 %v1217
  %v1219 = vpop.f32.mrb[0].mxu0
  %v1220 = vadd.f32 %v1109, %v1219
  %v1221 = vpop.f32.mrb[0].mxu0
  %1222 = vdwg.mxu0
  %1223 = vmatprep.subr.mxu0 0.0
  %v1224 = vand.u32 %v1010, 4294901760
  %v1225 = vsub.f32 %v1010, %v1224
  %1226 = vmatpush1.msra.mxu0 %v1225
  %1227 = vmatprep.subr.mxu0 0.0
  %v1228 = vand.u32 %v1011, 4294901760
  %v1229 = vsub.f32 %v1011, %v1228
  %1230 = vmatpush1.msra.mxu0 %v1229
  %1231 = vmatprep.subr.mxu0 0.0
  %v1232 = vand.u32 %v1012, 4294901760
  %v1233 = vsub.f32 %v1012, %v1232
  %1234 = vmatpush1.msra.mxu0 %v1233
  %1235 = vmatprep.subr.mxu0 0.0
  %v1236 = vand.u32 %v1013, 4294901760
  %v1237 = vsub.f32 %v1013, %v1236
  %1238 = vmatpush1.msra.mxu0 %v1237
  %1239 = vmatprep.subr.mxu0 0.0
  %v1240 = vand.u32 %v1014, 4294901760
  %v1241 = vsub.f32 %v1014, %v1240
  %1242 = vmatpush1.msra.mxu0 %v1241
  %1243 = vmatprep.subr.mxu0 0.0
  %v1244 = vand.u32 %v1015, 4294901760
  %v1245 = vsub.f32 %v1015, %v1244
  %1246 = vmatpush1.msra.mxu0 %v1245
  %1247 = vmatprep.subr.mxu0 0.0
  %v1248 = vand.u32 %v1016, 4294901760
  %v1249 = vsub.f32 %v1016, %v1248
  %1250 = vmatpush1.msra.mxu0 %v1249
  %1251 = vmatprep.subr.mxu0 0.0
  %v1252 = vand.u32 %v1017, 4294901760
  %v1253 = vsub.f32 %v1017, %v1252
  %1254 = vmatpush1.msra.mxu0 %v1253
  %1255 = vmatprep.subr.mxu0 0.0
  %1256 = vmatpush1.msra.mxu0 0.0
  %1257 = vmatprep.subr.mxu0 0.0
  %1258 = vmatpush1.msra.mxu0 0.0
  %1259 = vmatprep.subr.mxu0 0.0
  %1260 = vmatpush1.msra.mxu0 0.0
  %1261 = vmatprep.subr.mxu0 0.0
  %1262 = vmatpush1.msra.mxu0 0.0
  %1263 = vmatprep.subr.mxu0 0.0
  %1264 = vmatpush1.msra.mxu0 0.0
  %1265 = vmatprep.subr.mxu0 0.0
  %1266 = vmatpush1.msra.mxu0 0.0
  %1267 = vmatprep.subr.mxu0 0.0
  %1268 = vmatpush1.msra.mxu0 0.0
  %1269 = vmatprep.subr.mxu0 0.0
  %1270 = vmatpush1.msra.mxu0 0.0
  %1271 = vmatprep.subr.mxu0 0.0
  %1272 = vmatpush1.msra.mxu0 0.0
  %1273 = vmatprep.subr.mxu0 0.0
  %1274 = vmatpush1.msra.mxu0 0.0
  %1275 = vmatprep.subr.mxu0 0.0
  %1276 = vmatpush1.msra.mxu0 0.0
  %1277 = vmatprep.subr.mxu0 0.0
  %1278 = vmatpush1.msra.mxu0 0.0
  %1279 = vmatprep.subr.mxu0 0.0
  %1280 = vmatpush1.msra.mxu0 0.0
  %1281 = vmatprep.subr.mxu0 0.0
  %1282 = vmatpush1.msra.mxu0 0.0
  %1283 = vmatprep.subr.mxu0 0.0
  %1284 = vmatpush1.msra.mxu0 0.0
  %1285 = vmatprep.subr.mxu0 0.0
  %1286 = vmatpush1.msra.mxu0 0.0
  %1287 = vmatprep.subr.mxu0 0.0
  %1288 = vmatpush1.msra.mxu0 0.0
  %1289 = vmatprep.subr.mxu0 0.0
  %1290 = vmatpush1.msra.mxu0 0.0
  %1291 = vmatprep.subr.mxu0 0.0
  %1292 = vmatpush1.msra.mxu0 0.0
  %1293 = vmatprep.subr.mxu0 0.0
  %1294 = vmatpush1.msra.mxu0 0.0
  %1295 = vmatprep.subr.mxu0 0.0
  %1296 = vmatpush1.msra.mxu0 0.0
  %1297 = vmatprep.subr.mxu0 0.0
  %1298 = vmatpush1.msra.mxu0 0.0
  %1299 = vmatprep.subr.mxu0 0.0
  %1300 = vmatpush1.msra.mxu0 0.0
  %1301 = vmatprep.subr.mxu0 0.0
  %1302 = vmatpush1.msra.mxu0 0.0
  %1303 = vmatprep.mubr.f32.mxu0 0.0
  %v1304 = vand.u32 %v1027, 4294901760
  %v1305 = vsub.f32 %v1027, %v1304
  %1306 = vmatmul.mubr.f32.gmra.mrb[0].mxu0 %v1305
  %v1307 = vpop.f32.mrb[0].mxu0
  %v1308 = vadd.f32 %v1220, %v1307
  %v1309 = vpop.f32.mrb[0].mxu0
  %1310 = vdwg.mxu0
  %1311 = vmatprep.subr.mxu0 0.0
  %v1312 = vand.u32 %v1010, 4294901760
  %1313 = vmatpush1.msra.mxu0 %v1312
  %1314 = vmatprep.subr.mxu0 0.0
  %v1315 = vand.u32 %v1011, 4294901760
  %1316 = vmatpush1.msra.mxu0 %v1315
  %1317 = vmatprep.subr.mxu0 0.0
  %v1318 = vand.u32 %v1012, 4294901760
  %1319 = vmatpush1.msra.mxu0 %v1318
  %1320 = vmatprep.subr.mxu0 0.0
  %v1321 = vand.u32 %v1013, 4294901760
  %1322 = vmatpush1.msra.mxu0 %v1321
  %1323 = vmatprep.subr.mxu0 0.0
  %v1324 = vand.u32 %v1014, 4294901760
  %1325 = vmatpush1.msra.mxu0 %v1324
  %1326 = vmatprep.subr.mxu0 0.0
  %v1327 = vand.u32 %v1015, 4294901760
  %1328 = vmatpush1.msra.mxu0 %v1327
  %1329 = vmatprep.subr.mxu0 0.0
  %v1330 = vand.u32 %v1016, 4294901760
  %1331 = vmatpush1.msra.mxu0 %v1330
  %1332 = vmatprep.subr.mxu0 0.0
  %v1333 = vand.u32 %v1017, 4294901760
  %1334 = vmatpush1.msra.mxu0 %v1333
  %1335 = vmatprep.subr.mxu0 0.0
  %1336 = vmatpush1.msra.mxu0 0.0
  %1337 = vmatprep.subr.mxu0 0.0
  %1338 = vmatpush1.msra.mxu0 0.0
  %1339 = vmatprep.subr.mxu0 0.0
  %1340 = vmatpush1.msra.mxu0 0.0
  %1341 = vmatprep.subr.mxu0 0.0
  %1342 = vmatpush1.msra.mxu0 0.0
  %1343 = vmatprep.subr.mxu0 0.0
  %1344 = vmatpush1.msra.mxu0 0.0
  %1345 = vmatprep.subr.mxu0 0.0
  %1346 = vmatpush1.msra.mxu0 0.0
  %1347 = vmatprep.subr.mxu0 0.0
  %1348 = vmatpush1.msra.mxu0 0.0
  %1349 = vmatprep.subr.mxu0 0.0
  %1350 = vmatpush1.msra.mxu0 0.0
  %1351 = vmatprep.subr.mxu0 0.0
  %1352 = vmatpush1.msra.mxu0 0.0
  %1353 = vmatprep.subr.mxu0 0.0
  %1354 = vmatpush1.msra.mxu0 0.0
  %1355 = vmatprep.subr.mxu0 0.0
  %1356 = vmatpush1.msra.mxu0 0.0
  %1357 = vmatprep.subr.mxu0 0.0
  %1358 = vmatpush1.msra.mxu0 0.0
  %1359 = vmatprep.subr.mxu0 0.0
  %1360 = vmatpush1.msra.mxu0 0.0
  %1361 = vmatprep.subr.mxu0 0.0
  %1362 = vmatpush1.msra.mxu0 0.0
  %1363 = vmatprep.subr.mxu0 0.0
  %1364 = vmatpush1.msra.mxu0 0.0
  %1365 = vmatprep.subr.mxu0 0.0
  %1366 = vmatpush1.msra.mxu0 0.0
  %1367 = vmatprep.subr.mxu0 0.0
  %1368 = vmatpush1.msra.mxu0 0.0
  %1369 = vmatprep.subr.mxu0 0.0
  %1370 = vmatpush1.msra.mxu0 0.0
  %1371 = vmatprep.subr.mxu0 0.0
  %1372 = vmatpush1.msra.mxu0 0.0
  %1373 = vmatprep.subr.mxu0 0.0
  %1374 = vmatpush1.msra.mxu0 0.0
  %1375 = vmatprep.subr.mxu0 0.0
  %1376 = vmatpush1.msra.mxu0 0.0
  %1377 = vmatprep.subr.mxu0 0.0
  %1378 = vmatpush1.msra.mxu0 0.0
  %1379 = vmatprep.subr.mxu0 0.0
  %1380 = vmatpush1.msra.mxu0 0.0
  %1381 = vmatprep.subr.mxu0 0.0
  %1382 = vmatpush1.msra.mxu0 0.0
  %1383 = vmatprep.mubr.f32.mxu0 0.0
  %v1384 = vand.u32 %v1027, 4294901760
  %v1385 = vsub.f32 %v1027, %v1384
  %v1386 = vand.u32 %v1385, 4294901760
  %1387 = vmatmul.mubr.f32.gmra.mrb[0].mxu0 %v1386
  %v1388 = vpop.f32.mrb[0].mxu0
  %v1389 = vadd.f32 %v1308, %v1388
  %v1390 = vpop.f32.mrb[0].mxu0
  %1391 = vdwg.mxu0
  %1392 = vmatprep.subr.mxu0 0.0
  %v1393 = vand.u32 %v1010, 4294901760
  %v1394 = vsub.f32 %v1010, %v1393
  %v1395 = vand.u32 %v1394, 4294901760
  %1396 = vmatpush1.msra.mxu0 %v1395
  %1397 = vmatprep.subr.mxu0 0.0
  %v1398 = vand.u32 %v1011, 4294901760
  %v1399 = vsub.f32 %v1011, %v1398
  %v1400 = vand.u32 %v1399, 4294901760
  %1401 = vmatpush1.msra.mxu0 %v1400
  %1402 = vmatprep.subr.mxu0 0.0
  %v1403 = vand.u32 %v1012, 4294901760
  %v1404 = vsub.f32 %v1012, %v1403
  %v1405 = vand.u32 %v1404, 4294901760
  %1406 = vmatpush1.msra.mxu0 %v1405
  %1407 = vmatprep.subr.mxu0 0.0
  %v1408 = vand.u32 %v1013, 4294901760
  %v1409 = vsub.f32 %v1013, %v1408
  %v1410 = vand.u32 %v1409, 4294901760
  %1411 = vmatpush1.msra.mxu0 %v1410
  %1412 = vmatprep.subr.mxu0 0.0
  %v1413 = vand.u32 %v1014, 4294901760
  %v1414 = vsub.f32 %v1014, %v1413
  %v1415 = vand.u32 %v1414, 4294901760
  %1416 = vmatpush1.msra.mxu0 %v1415
  %1417 = vmatprep.subr.mxu0 0.0
  %v1418 = vand.u32 %v1015, 4294901760
  %v1419 = vsub.f32 %v1015, %v1418
  %v1420 = vand.u32 %v1419, 4294901760
  %1421 = vmatpush1.msra.mxu0 %v1420
  %1422 = vmatprep.subr.mxu0 0.0
  %v1423 = vand.u32 %v1016, 4294901760
  %v1424 = vsub.f32 %v1016, %v1423
  %v1425 = vand.u32 %v1424, 4294901760
  %1426 = vmatpush1.msra.mxu0 %v1425
  %1427 = vmatprep.subr.mxu0 0.0
  %v1428 = vand.u32 %v1017, 4294901760
  %v1429 = vsub.f32 %v1017, %v1428
  %v1430 = vand.u32 %v1429, 4294901760
  %1431 = vmatpush1.msra.mxu0 %v1430
  %1432 = vmatprep.subr.mxu0 0.0
  %1433 = vmatpush1.msra.mxu0 0.0
  %1434 = vmatprep.subr.mxu0 0.0
  %1435 = vmatpush1.msra.mxu0 0.0
  %1436 = vmatprep.subr.mxu0 0.0
  %1437 = vmatpush1.msra.mxu0 0.0
  %1438 = vmatprep.subr.mxu0 0.0
  %1439 = vmatpush1.msra.mxu0 0.0
  %1440 = vmatprep.subr.mxu0 0.0
  %1441 = vmatpush1.msra.mxu0 0.0
  %1442 = vmatprep.subr.mxu0 0.0
  %1443 = vmatpush1.msra.mxu0 0.0
  %1444 = vmatprep.subr.mxu0 0.0
  %1445 = vmatpush1.msra.mxu0 0.0
  %1446 = vmatprep.subr.mxu0 0.0
  %1447 = vmatpush1.msra.mxu0 0.0
  %1448 = vmatprep.subr.mxu0 0.0
  %1449 = vmatpush1.msra.mxu0 0.0
  %1450 = vmatprep.subr.mxu0 0.0
  %1451 = vmatpush1.msra.mxu0 0.0
  %1452 = vmatprep.subr.mxu0 0.0
  %1453 = vmatpush1.msra.mxu0 0.0
  %1454 = vmatprep.subr.mxu0 0.0
  %1455 = vmatpush1.msra.mxu0 0.0
  %1456 = vmatprep.subr.mxu0 0.0
  %1457 = vmatpush1.msra.mxu0 0.0
  %1458 = vmatprep.subr.mxu0 0.0
  %1459 = vmatpush1.msra.mxu0 0.0
  %1460 = vmatprep.subr.mxu0 0.0
  %1461 = vmatpush1.msra.mxu0 0.0
  %1462 = vmatprep.subr.mxu0 0.0
  %1463 = vmatpush1.msra.mxu0 0.0
  %1464 = vmatprep.subr.mxu0 0.0
  %1465 = vmatpush1.msra.mxu0 0.0
  %1466 = vmatprep.subr.mxu0 0.0
  %1467 = vmatpush1.msra.mxu0 0.0
  %1468 = vmatprep.subr.mxu0 0.0
  %1469 = vmatpush1.msra.mxu0 0.0
  %1470 = vmatprep.subr.mxu0 0.0
  %1471 = vmatpush1.msra.mxu0 0.0
  %1472 = vmatprep.subr.mxu0 0.0
  %1473 = vmatpush1.msra.mxu0 0.0
  %1474 = vmatprep.subr.mxu0 0.0
  %1475 = vmatpush1.msra.mxu0 0.0
  %1476 = vmatprep.subr.mxu0 0.0
  %1477 = vmatpush1.msra.mxu0 0.0
  %1478 = vmatprep.subr.mxu0 0.0
  %1479 = vmatpush1.msra.mxu0 0.0
  %1480 = vmatprep.mubr.f32.mxu0 0.0
  %v1481 = vand.u32 %v1027, 4294901760
  %1482 = vmatmul.mubr.f32.gmra.mrb[0].mxu0 %v1481
  %v1483 = vpop.f32.mrb[0].mxu0
  %v1484 = vadd.f32 %v1389, %v1483
  %v1485 = vpop.f32.mrb[0].mxu0
  %1486 = vdwg.mxu0
  %1487 = vmatprep.subr.mxu0 0.0
  %v1488 = vand.u32 %v1010, 4294901760
  %1489 = vmatpush1.msra.mxu0 %v1488
  %1490 = vmatprep.subr.mxu0 0.0
  %v1491 = vand.u32 %v1011, 4294901760
  %1492 = vmatpush1.msra.mxu0 %v1491
  %1493 = vmatprep.subr.mxu0 0.0
  %v1494 = vand.u32 %v1012, 4294901760
  %1495 = vmatpush1.msra.mxu0 %v1494
  %1496 = vmatprep.subr.mxu0 0.0
  %v1497 = vand.u32 %v1013, 4294901760
  %1498 = vmatpush1.msra.mxu0 %v1497
  %1499 = vmatprep.subr.mxu0 0.0
  %v1500 = vand.u32 %v1014, 4294901760
  %1501 = vmatpush1.msra.mxu0 %v1500
  %1502 = vmatprep.subr.mxu0 0.0
  %v1503 = vand.u32 %v1015, 4294901760
  %1504 = vmatpush1.msra.mxu0 %v1503
  %1505 = vmatprep.subr.mxu0 0.0
  %v1506 = vand.u32 %v1016, 4294901760
  %1507 = vmatpush1.msra.mxu0 %v1506
  %1508 = vmatprep.subr.mxu0 0.0
  %v1509 = vand.u32 %v1017, 4294901760
  %1510 = vmatpush1.msra.mxu0 %v1509
  %1511 = vmatprep.subr.mxu0 0.0
  %1512 = vmatpush1.msra.mxu0 0.0
  %1513 = vmatprep.subr.mxu0 0.0
  %1514 = vmatpush1.msra.mxu0 0.0
  %1515 = vmatprep.subr.mxu0 0.0
  %1516 = vmatpush1.msra.mxu0 0.0
  %1517 = vmatprep.subr.mxu0 0.0
  %1518 = vmatpush1.msra.mxu0 0.0
  %1519 = vmatprep.subr.mxu0 0.0
  %1520 = vmatpush1.msra.mxu0 0.0
  %1521 = vmatprep.subr.mxu0 0.0
  %1522 = vmatpush1.msra.mxu0 0.0
  %1523 = vmatprep.subr.mxu0 0.0
  %1524 = vmatpush1.msra.mxu0 0.0
  %1525 = vmatprep.subr.mxu0 0.0
  %1526 = vmatpush1.msra.mxu0 0.0
  %1527 = vmatprep.subr.mxu0 0.0
  %1528 = vmatpush1.msra.mxu0 0.0
  %1529 = vmatprep.subr.mxu0 0.0
  %1530 = vmatpush1.msra.mxu0 0.0
  %1531 = vmatprep.subr.mxu0 0.0
  %1532 = vmatpush1.msra.mxu0 0.0
  %1533 = vmatprep.subr.mxu0 0.0
  %1534 = vmatpush1.msra.mxu0 0.0
  %1535 = vmatprep.subr.mxu0 0.0
  %1536 = vmatpush1.msra.mxu0 0.0
  %1537 = vmatprep.subr.mxu0 0.0
  %1538 = vmatpush1.msra.mxu0 0.0
  %1539 = vmatprep.subr.mxu0 0.0
  %1540 = vmatpush1.msra.mxu0 0.0
  %1541 = vmatprep.subr.mxu0 0.0
  %1542 = vmatpush1.msra.mxu0 0.0
  %1543 = vmatprep.subr.mxu0 0.0
  %1544 = vmatpush1.msra.mxu0 0.0
  %1545 = vmatprep.subr.mxu0 0.0
  %1546 = vmatpush1.msra.mxu0 0.0
  %1547 = vmatprep.subr.mxu0 0.0
  %1548 = vmatpush1.msra.mxu0 0.0
  %1549 = vmatprep.subr.mxu0 0.0
  %1550 = vmatpush1.msra.mxu0 0.0
  %1551 = vmatprep.subr.mxu0 0.0
  %1552 = vmatpush1.msra.mxu0 0.0
  %1553 = vmatprep.subr.mxu0 0.0
  %1554 = vmatpush1.msra.mxu0 0.0
  %1555 = vmatprep.subr.mxu0 0.0
  %1556 = vmatpush1.msra.mxu0 0.0
  %1557 = vmatprep.subr.mxu0 0.0
  %1558 = vmatpush1.msra.mxu0 0.0
  %1559 = vmatprep.mubr.f32.mxu0 0.0
  %v1560 = vand.u32 %v1027, 4294901760
  %1561 = vmatmul.mubr.f32.gmra.mrb[0].mxu0 %v1560
  %v1562 = vpop.f32.mrb[0].mxu0
  %v1563 = vadd.f32 %v1484, %v1562
  %v1564 = vpop.f32.mrb[0].mxu0
  %1565 = vdwg.mxu0
  %v1566 = vld [vmem:[%s9] sm:$0xff]
  %v1567 = vld [vmem:[%s9 + $0x8] sm:$0xff]
  %v1568 = vld [vmem:[%s9 + $0x10] sm:$0xff]
  %v1569 = vld [vmem:[%s9 + $0x18] sm:$0xff]
  %v1570 = vld [vmem:[%s9 + $0x20] sm:$0xff]
  %v1571 = vld [vmem:[%s9 + $0x28] sm:$0xff]
  %v1572 = vld [vmem:[%s9 + $0x30] sm:$0xff]
  %v1573 = vld [vmem:[%s9 + $0x38] sm:$0xff]
  %v1574 = vld [vmem:[%s9 + $0x40] sm:$0xff]
  %v1575 = vld [vmem:[%s9 + $0x48] sm:$0xff]
  %v1576 = vld [vmem:[%s9 + $0x50] sm:$0xff]
  %v1577 = vld [vmem:[%s9 + $0x58] sm:$0xff]
  %v1578 = vld [vmem:[%s9 + $0x60] sm:$0xff]
  %v1579 = vld [vmem:[%s9 + $0x68] sm:$0xff]
  %v1580 = vld [vmem:[%s9 + $0x70] sm:$0xff]
  %v1581 = vld [vmem:[%s9 + $0x78] sm:$0xff]
  %1582 = vmatprep.subr.mxu0 0.0
  %v1583 = vand.u32 %v1566, 4294901760
  %1584 = vmatpush1.msra.mxu0 %v1583
  %1585 = vmatprep.subr.mxu0 0.0
  %v1586 = vand.u32 %v1567, 4294901760
  %1587 = vmatpush1.msra.mxu0 %v1586
  %1588 = vmatprep.subr.mxu0 0.0
  %v1589 = vand.u32 %v1568, 4294901760
  %1590 = vmatpush1.msra.mxu0 %v1589
  %1591 = vmatprep.subr.mxu0 0.0
  %v1592 = vand.u32 %v1569, 4294901760
  %1593 = vmatpush1.msra.mxu0 %v1592
  %1594 = vmatprep.subr.mxu0 0.0
  %v1595 = vand.u32 %v1570, 4294901760
  %1596 = vmatpush1.msra.mxu0 %v1595
  %1597 = vmatprep.subr.mxu0 0.0
  %v1598 = vand.u32 %v1571, 4294901760
  %1599 = vmatpush1.msra.mxu0 %v1598
  %1600 = vmatprep.subr.mxu0 0.0
  %v1601 = vand.u32 %v1572, 4294901760
  %1602 = vmatpush1.msra.mxu0 %v1601
  %1603 = vmatprep.subr.mxu0 0.0
  %v1604 = vand.u32 %v1573, 4294901760
  %1605 = vmatpush1.msra.mxu0 %v1604
  %1606 = vmatprep.subr.mxu0 0.0
  %v1607 = vand.u32 %v1574, 4294901760
  %1608 = vmatpush1.msra.mxu0 %v1607
  %1609 = vmatprep.subr.mxu0 0.0
  %v1610 = vand.u32 %v1575, 4294901760
  %1611 = vmatpush1.msra.mxu0 %v1610
  %1612 = vmatprep.subr.mxu0 0.0
  %v1613 = vand.u32 %v1576, 4294901760
  %1614 = vmatpush1.msra.mxu0 %v1613
  %1615 = vmatprep.subr.mxu0 0.0
  %v1616 = vand.u32 %v1577, 4294901760
  %1617 = vmatpush1.msra.mxu0 %v1616
  %1618 = vmatprep.subr.mxu0 0.0
  %v1619 = vand.u32 %v1578, 4294901760
  %1620 = vmatpush1.msra.mxu0 %v1619
  %1621 = vmatprep.subr.mxu0 0.0
  %v1622 = vand.u32 %v1579, 4294901760
  %1623 = vmatpush1.msra.mxu0 %v1622
  %1624 = vmatprep.subr.mxu0 0.0
  %v1625 = vand.u32 %v1580, 4294901760
  %1626 = vmatpush1.msra.mxu0 %v1625
  %1627 = vmatprep.subr.mxu0 0.0
  %v1628 = vand.u32 %v1581, 4294901760
  %1629 = vmatpush1.msra.mxu0 %v1628
  %1630 = vmatprep.subr.mxu0 0.0
  %1631 = vmatpush1.msra.mxu0 0.0
  %1632 = vmatprep.subr.mxu0 0.0
  %1633 = vmatpush1.msra.mxu0 0.0
  %1634 = vmatprep.subr.mxu0 0.0
  %1635 = vmatpush1.msra.mxu0 0.0
  %1636 = vmatprep.subr.mxu0 0.0
  %1637 = vmatpush1.msra.mxu0 0.0
  %1638 = vmatprep.subr.mxu0 0.0
  %1639 = vmatpush1.msra.mxu0 0.0
  %1640 = vmatprep.subr.mxu0 0.0
  %1641 = vmatpush1.msra.mxu0 0.0
  %1642 = vmatprep.subr.mxu0 0.0
  %1643 = vmatpush1.msra.mxu0 0.0
  %1644 = vmatprep.subr.mxu0 0.0
  %1645 = vmatpush1.msra.mxu0 0.0
  %1646 = vmatprep.subr.mxu0 0.0
  %1647 = vmatpush1.msra.mxu0 0.0
  %1648 = vmatprep.subr.mxu0 0.0
  %1649 = vmatpush1.msra.mxu0 0.0
  %1650 = vmatprep.subr.mxu0 0.0
  %1651 = vmatpush1.msra.mxu0 0.0
  %1652 = vmatprep.subr.mxu0 0.0
  %1653 = vmatpush1.msra.mxu0 0.0
  %1654 = vmatprep.subr.mxu0 0.0
  %1655 = vmatpush1.msra.mxu0 0.0
  %1656 = vmatprep.subr.mxu0 0.0
  %1657 = vmatpush1.msra.mxu0 0.0
  %1658 = vmatprep.subr.mxu0 0.0
  %1659 = vmatpush1.msra.mxu0 0.0
  %1660 = vmatprep.subr.mxu0 0.0
  %1661 = vmatpush1.msra.mxu0 0.0
  %1662 = vmatprep.mubr.f32.mxu0 0.0
  %v1663 = vand.u32 %v1563, 4294901760
  %v1664 = vsub.f32 %v1563, %v1663
  %v1665 = vand.u32 %v1664, 4294901760
  %v1666 = vsub.f32 %v1664, %v1665
  %v1667 = vand.u32 %v1666, 4294901760
  %1668 = vmatmul.mubr.f32.gmra.mrb[0].mxu0 %v1667
  %v1669 = vpop.f32.mrb[0].mxu0
  %v1670 = vadd.f32 0.0, %v1669
  %v1671 = vpop.f32.mrb[0].mxu0
  %1672 = vdwg.mxu0
  %1673 = vmatprep.subr.mxu0 0.0
  %v1674 = vand.u32 %v1566, 4294901760
  %v1675 = vsub.f32 %v1566, %v1674
  %v1676 = vand.u32 %v1675, 4294901760
  %v1677 = vsub.f32 %v1675, %v1676
  %v1678 = vand.u32 %v1677, 4294901760
  %1679 = vmatpush1.msra.mxu0 %v1678
  %1680 = vmatprep.subr.mxu0 0.0
  %v1681 = vand.u32 %v1567, 4294901760
  %v1682 = vsub.f32 %v1567, %v1681
  %v1683 = vand.u32 %v1682, 4294901760
  %v1684 = vsub.f32 %v1682, %v1683
  %v1685 = vand.u32 %v1684, 4294901760
  %1686 = vmatpush1.msra.mxu0 %v1685
  %1687 = vmatprep.subr.mxu0 0.0
  %v1688 = vand.u32 %v1568, 4294901760
  %v1689 = vsub.f32 %v1568, %v1688
  %v1690 = vand.u32 %v1689, 4294901760
  %v1691 = vsub.f32 %v1689, %v1690
  %v1692 = vand.u32 %v1691, 4294901760
  %1693 = vmatpush1.msra.mxu0 %v1692
  %1694 = vmatprep.subr.mxu0 0.0
  %v1695 = vand.u32 %v1569, 4294901760
  %v1696 = vsub.f32 %v1569, %v1695
  %v1697 = vand.u32 %v1696, 4294901760
  %v1698 = vsub.f32 %v1696, %v1697
  %v1699 = vand.u32 %v1698, 4294901760
  %1700 = vmatpush1.msra.mxu0 %v1699
  %1701 = vmatprep.subr.mxu0 0.0
  %v1702 = vand.u32 %v1570, 4294901760
  %v1703 = vsub.f32 %v1570, %v1702
  %v1704 = vand.u32 %v1703, 4294901760
  %v1705 = vsub.f32 %v1703, %v1704
  %v1706 = vand.u32 %v1705, 4294901760
  %1707 = vmatpush1.msra.mxu0 %v1706
  %1708 = vmatprep.subr.mxu0 0.0
  %v1709 = vand.u32 %v1571, 4294901760
  %v1710 = vsub.f32 %v1571, %v1709
  %v1711 = vand.u32 %v1710, 4294901760
  %v1712 = vsub.f32 %v1710, %v1711
  %v1713 = vand.u32 %v1712, 4294901760
  %1714 = vmatpush1.msra.mxu0 %v1713
  %1715 = vmatprep.subr.mxu0 0.0
  %v1716 = vand.u32 %v1572, 4294901760
  %v1717 = vsub.f32 %v1572, %v1716
  %v1718 = vand.u32 %v1717, 4294901760
  %v1719 = vsub.f32 %v1717, %v1718
  %v1720 = vand.u32 %v1719, 4294901760
  %1721 = vmatpush1.msra.mxu0 %v1720
  %1722 = vmatprep.subr.mxu0 0.0
  %v1723 = vand.u32 %v1573, 4294901760
  %v1724 = vsub.f32 %v1573, %v1723
  %v1725 = vand.u32 %v1724, 4294901760
  %v1726 = vsub.f32 %v1724, %v1725
  %v1727 = vand.u32 %v1726, 4294901760
  %1728 = vmatpush1.msra.mxu0 %v1727
  %1729 = vmatprep.subr.mxu0 0.0
  %v1730 = vand.u32 %v1574, 4294901760
  %v1731 = vsub.f32 %v1574, %v1730
  %v1732 = vand.u32 %v1731, 4294901760
  %v1733 = vsub.f32 %v1731, %v1732
  %v1734 = vand.u32 %v1733, 4294901760
  %1735 = vmatpush1.msra.mxu0 %v1734
  %1736 = vmatprep.subr.mxu0 0.0
  %v1737 = vand.u32 %v1575, 4294901760
  %v1738 = vsub.f32 %v1575, %v1737
  %v1739 = vand.u32 %v1738, 4294901760
  %v1740 = vsub.f32 %v1738, %v1739
  %v1741 = vand.u32 %v1740, 4294901760
  %1742 = vmatpush1.msra.mxu0 %v1741
  %1743 = vmatprep.subr.mxu0 0.0
  %v1744 = vand.u32 %v1576, 4294901760
  %v1745 = vsub.f32 %v1576, %v1744
  %v1746 = vand.u32 %v1745, 4294901760
  %v1747 = vsub.f32 %v1745, %v1746
  %v1748 = vand.u32 %v1747, 4294901760
  %1749 = vmatpush1.msra.mxu0 %v1748
  %1750 = vmatprep.subr.mxu0 0.0
  %v1751 = vand.u32 %v1577, 4294901760
  %v1752 = vsub.f32 %v1577, %v1751
  %v1753 = vand.u32 %v1752, 4294901760
  %v1754 = vsub.f32 %v1752, %v1753
  %v1755 = vand.u32 %v1754, 4294901760
  %1756 = vmatpush1.msra.mxu0 %v1755
  %1757 = vmatprep.subr.mxu0 0.0
  %v1758 = vand.u32 %v1578, 4294901760
  %v1759 = vsub.f32 %v1578, %v1758
  %v1760 = vand.u32 %v1759, 4294901760
  %v1761 = vsub.f32 %v1759, %v1760
  %v1762 = vand.u32 %v1761, 4294901760
  %1763 = vmatpush1.msra.mxu0 %v1762
  %1764 = vmatprep.subr.mxu0 0.0
  %v1765 = vand.u32 %v1579, 4294901760
  %v1766 = vsub.f32 %v1579, %v1765
  %v1767 = vand.u32 %v1766, 4294901760
  %v1768 = vsub.f32 %v1766, %v1767
  %v1769 = vand.u32 %v1768, 4294901760
  %1770 = vmatpush1.msra.mxu0 %v1769
  %1771 = vmatprep.subr.mxu0 0.0
  %v1772 = vand.u32 %v1580, 4294901760
  %v1773 = vsub.f32 %v1580, %v1772
  %v1774 = vand.u32 %v1773, 4294901760
  %v1775 = vsub.f32 %v1773, %v1774
  %v1776 = vand.u32 %v1775, 4294901760
  %1777 = vmatpush1.msra.mxu0 %v1776
  %1778 = vmatprep.subr.mxu0 0.0
  %v1779 = vand.u32 %v1581, 4294901760
  %v1780 = vsub.f32 %v1581, %v1779
  %v1781 = vand.u32 %v1780, 4294901760
  %v1782 = vsub.f32 %v1780, %v1781
  %v1783 = vand.u32 %v1782, 4294901760
  %1784 = vmatpush1.msra.mxu0 %v1783
  %1785 = vmatprep.subr.mxu0 0.0
  %1786 = vmatpush1.msra.mxu0 0.0
  %1787 = vmatprep.subr.mxu0 0.0
  %1788 = vmatpush1.msra.mxu0 0.0
  %1789 = vmatprep.subr.mxu0 0.0
  %1790 = vmatpush1.msra.mxu0 0.0
  %1791 = vmatprep.subr.mxu0 0.0
  %1792 = vmatpush1.msra.mxu0 0.0
  %1793 = vmatprep.subr.mxu0 0.0
  %1794 = vmatpush1.msra.mxu0 0.0
  %1795 = vmatprep.subr.mxu0 0.0
  %1796 = vmatpush1.msra.mxu0 0.0
  %1797 = vmatprep.subr.mxu0 0.0
  %1798 = vmatpush1.msra.mxu0 0.0
  %1799 = vmatprep.subr.mxu0 0.0
  %1800 = vmatpush1.msra.mxu0 0.0
  %1801 = vmatprep.subr.mxu0 0.0
  %1802 = vmatpush1.msra.mxu0 0.0
  %1803 = vmatprep.subr.mxu0 0.0
  %1804 = vmatpush1.msra.mxu0 0.0
  %1805 = vmatprep.subr.mxu0 0.0
  %1806 = vmatpush1.msra.mxu0 0.0
  %1807 = vmatprep.subr.mxu0 0.0
  %1808 = vmatpush1.msra.mxu0 0.0
  %1809 = vmatprep.subr.mxu0 0.0
  %1810 = vmatpush1.msra.mxu0 0.0
  %1811 = vmatprep.subr.mxu0 0.0
  %1812 = vmatpush1.msra.mxu0 0.0
  %1813 = vmatprep.subr.mxu0 0.0
  %1814 = vmatpush1.msra.mxu0 0.0
  %1815 = vmatprep.subr.mxu0 0.0
  %1816 = vmatpush1.msra.mxu0 0.0
  %1817 = vmatprep.mubr.f32.mxu0 0.0
  %v1818 = vand.u32 %v1563, 4294901760
  %1819 = vmatmul.mubr.f32.gmra.mrb[0].mxu0 %v1818
  %v1820 = vpop.f32.mrb[0].mxu0
  %v1821 = vadd.f32 %v1670, %v1820
  %v1822 = vpop.f32.mrb[0].mxu0
  %1823 = vdwg.mxu0
  %1824 = vmatprep.subr.mxu0 0.0
  %v1825 = vand.u32 %v1566, 4294901760
  %v1826 = vsub.f32 %v1566, %v1825
  %1827 = vmatpush1.msra.mxu0 %v1826
  %1828 = vmatprep.subr.mxu0 0.0
  %v1829 = vand.u32 %v1567, 4294901760
  %v1830 = vsub.f32 %v1567, %v1829
  %1831 = vmatpush1.msra.mxu0 %v1830
  %1832 = vmatprep.subr.mxu0 0.0
  %v1833 = vand.u32 %v1568, 4294901760
  %v1834 = vsub.f32 %v1568, %v1833
  %1835 = vmatpush1.msra.mxu0 %v1834
  %1836 = vmatprep.subr.mxu0 0.0
  %v1837 = vand.u32 %v1569, 4294901760
  %v1838 = vsub.f32 %v1569, %v1837
  %1839 = vmatpush1.msra.mxu0 %v1838
  %1840 = vmatprep.subr.mxu0 0.0
  %v1841 = vand.u32 %v1570, 4294901760
  %v1842 = vsub.f32 %v1570, %v1841
  %1843 = vmatpush1.msra.mxu0 %v1842
  %1844 = vmatprep.subr.mxu0 0.0
  %v1845 = vand.u32 %v1571, 4294901760
  %v1846 = vsub.f32 %v1571, %v1845
  %1847 = vmatpush1.msra.mxu0 %v1846
  %1848 = vmatprep.subr.mxu0 0.0
  %v1849 = vand.u32 %v1572, 4294901760
  %v1850 = vsub.f32 %v1572, %v1849
  %1851 = vmatpush1.msra.mxu0 %v1850
  %1852 = vmatprep.subr.mxu0 0.0
  %v1853 = vand.u32 %v1573, 4294901760
  %v1854 = vsub.f32 %v1573, %v1853
  %1855 = vmatpush1.msra.mxu0 %v1854
  %1856 = vmatprep.subr.mxu0 0.0
  %v1857 = vand.u32 %v1574, 4294901760
  %v1858 = vsub.f32 %v1574, %v1857
  %1859 = vmatpush1.msra.mxu0 %v1858
  %1860 = vmatprep.subr.mxu0 0.0
  %v1861 = vand.u32 %v1575, 4294901760
  %v1862 = vsub.f32 %v1575, %v1861
  %1863 = vmatpush1.msra.mxu0 %v1862
  %1864 = vmatprep.subr.mxu0 0.0
  %v1865 = vand.u32 %v1576, 4294901760
  %v1866 = vsub.f32 %v1576, %v1865
  %1867 = vmatpush1.msra.mxu0 %v1866
  %1868 = vmatprep.subr.mxu0 0.0
  %v1869 = vand.u32 %v1577, 4294901760
  %v1870 = vsub.f32 %v1577, %v1869
  %1871 = vmatpush1.msra.mxu0 %v1870
  %1872 = vmatprep.subr.mxu0 0.0
  %v1873 = vand.u32 %v1578, 4294901760
  %v1874 = vsub.f32 %v1578, %v1873
  %1875 = vmatpush1.msra.mxu0 %v1874
  %1876 = vmatprep.subr.mxu0 0.0
  %v1877 = vand.u32 %v1579, 4294901760
  %v1878 = vsub.f32 %v1579, %v1877
  %1879 = vmatpush1.msra.mxu0 %v1878
  %1880 = vmatprep.subr.mxu0 0.0
  %v1881 = vand.u32 %v1580, 4294901760
  %v1882 = vsub.f32 %v1580, %v1881
  %1883 = vmatpush1.msra.mxu0 %v1882
  %1884 = vmatprep.subr.mxu0 0.0
  %v1885 = vand.u32 %v1581, 4294901760
  %v1886 = vsub.f32 %v1581, %v1885
  %1887 = vmatpush1.msra.mxu0 %v1886
  %1888 = vmatprep.subr.mxu0 0.0
  %1889 = vmatpush1.msra.mxu0 0.0
  %1890 = vmatprep.subr.mxu0 0.0
  %1891 = vmatpush1.msra.mxu0 0.0
  %1892 = vmatprep.subr.mxu0 0.0
  %1893 = vmatpush1.msra.mxu0 0.0
  %1894 = vmatprep.subr.mxu0 0.0
  %1895 = vmatpush1.msra.mxu0 0.0
  %1896 = vmatprep.subr.mxu0 0.0
  %1897 = vmatpush1.msra.mxu0 0.0
  %1898 = vmatprep.subr.mxu0 0.0
  %1899 = vmatpush1.msra.mxu0 0.0
  %1900 = vmatprep.subr.mxu0 0.0
  %1901 = vmatpush1.msra.mxu0 0.0
  %1902 = vmatprep.subr.mxu0 0.0
  %1903 = vmatpush1.msra.mxu0 0.0
  %1904 = vmatprep.subr.mxu0 0.0
  %1905 = vmatpush1.msra.mxu0 0.0
  %1906 = vmatprep.subr.mxu0 0.0
  %1907 = vmatpush1.msra.mxu0 0.0
  %1908 = vmatprep.subr.mxu0 0.0
  %1909 = vmatpush1.msra.mxu0 0.0
  %1910 = vmatprep.subr.mxu0 0.0
  %1911 = vmatpush1.msra.mxu0 0.0
  %1912 = vmatprep.subr.mxu0 0.0
  %1913 = vmatpush1.msra.mxu0 0.0
  %1914 = vmatprep.subr.mxu0 0.0
  %1915 = vmatpush1.msra.mxu0 0.0
  %1916 = vmatprep.subr.mxu0 0.0
  %1917 = vmatpush1.msra.mxu0 0.0
  %1918 = vmatprep.subr.mxu0 0.0
  %1919 = vmatpush1.msra.mxu0 0.0
  %1920 = vmatprep.mubr.f32.mxu0 0.0
  %v1921 = vand.u32 %v1563, 4294901760
  %v1922 = vsub.f32 %v1563, %v1921
  %1923 = vmatmul.mubr.f32.gmra.mrb[0].mxu0 %v1922
  %v1924 = vpop.f32.mrb[0].mxu0
  %v1925 = vadd.f32 %v1821, %v1924
  %v1926 = vpop.f32.mrb[0].mxu0
  %1927 = vdwg.mxu0
  %1928 = vmatprep.subr.mxu0 0.0
  %v1929 = vand.u32 %v1566, 4294901760
  %1930 = vmatpush1.msra.mxu0 %v1929
  %1931 = vmatprep.subr.mxu0 0.0
  %v1932 = vand.u32 %v1567, 4294901760
  %1933 = vmatpush1.msra.mxu0 %v1932
  %1934 = vmatprep.subr.mxu0 0.0
  %v1935 = vand.u32 %v1568, 4294901760
  %1936 = vmatpush1.msra.mxu0 %v1935
  %1937 = vmatprep.subr.mxu0 0.0
  %v1938 = vand.u32 %v1569, 4294901760
  %1939 = vmatpush1.msra.mxu0 %v1938
  %1940 = vmatprep.subr.mxu0 0.0
  %v1941 = vand.u32 %v1570, 4294901760
  %1942 = vmatpush1.msra.mxu0 %v1941
  %1943 = vmatprep.subr.mxu0 0.0
  %v1944 = vand.u32 %v1571, 4294901760
  %1945 = vmatpush1.msra.mxu0 %v1944
  %1946 = vmatprep.subr.mxu0 0.0
  %v1947 = vand.u32 %v1572, 4294901760
  %1948 = vmatpush1.msra.mxu0 %v1947
  %1949 = vmatprep.subr.mxu0 0.0
  %v1950 = vand.u32 %v1573, 4294901760
  %1951 = vmatpush1.msra.mxu0 %v1950
  %1952 = vmatprep.subr.mxu0 0.0
  %v1953 = vand.u32 %v1574, 4294901760
  %1954 = vmatpush1.msra.mxu0 %v1953
  %1955 = vmatprep.subr.mxu0 0.0
  %v1956 = vand.u32 %v1575, 4294901760
  %1957 = vmatpush1.msra.mxu0 %v1956
  %1958 = vmatprep.subr.mxu0 0.0
  %v1959 = vand.u32 %v1576, 4294901760
  %1960 = vmatpush1.msra.mxu0 %v1959
  %1961 = vmatprep.subr.mxu0 0.0
  %v1962 = vand.u32 %v1577, 4294901760
  %1963 = vmatpush1.msra.mxu0 %v1962
  %1964 = vmatprep.subr.mxu0 0.0
  %v1965 = vand.u32 %v1578, 4294901760
  %1966 = vmatpush1.msra.mxu0 %v1965
  %1967 = vmatprep.subr.mxu0 0.0
  %v1968 = vand.u32 %v1579, 4294901760
  %1969 = vmatpush1.msra.mxu0 %v1968
  %1970 = vmatprep.subr.mxu0 0.0
  %v1971 = vand.u32 %v1580, 4294901760
  %1972 = vmatpush1.msra.mxu0 %v1971
  %1973 = vmatprep.subr.mxu0 0.0
  %v1974 = vand.u32 %v1581, 4294901760
  %1975 = vmatpush1.msra.mxu0 %v1974
  %1976 = vmatprep.subr.mxu0 0.0
  %1977 = vmatpush1.msra.mxu0 0.0
  %1978 = vmatprep.subr.mxu0 0.0
  %1979 = vmatpush1.msra.mxu0 0.0
  %1980 = vmatprep.subr.mxu0 0.0
  %1981 = vmatpush1.msra.mxu0 0.0
  %1982 = vmatprep.subr.mxu0 0.0
  %1983 = vmatpush1.msra.mxu0 0.0
  %1984 = vmatprep.subr.mxu0 0.0
  %1985 = vmatpush1.msra.mxu0 0.0
  %1986 = vmatprep.subr.mxu0 0.0
  %1987 = vmatpush1.msra.mxu0 0.0
  %1988 = vmatprep.subr.mxu0 0.0
  %1989 = vmatpush1.msra.mxu0 0.0
  %1990 = vmatprep.subr.mxu0 0.0
  %1991 = vmatpush1.msra.mxu0 0.0
  %1992 = vmatprep.subr.mxu0 0.0
  %1993 = vmatpush1.msra.mxu0 0.0
  %1994 = vmatprep.subr.mxu0 0.0
  %1995 = vmatpush1.msra.mxu0 0.0
  %1996 = vmatprep.subr.mxu0 0.0
  %1997 = vmatpush1.msra.mxu0 0.0
  %1998 = vmatprep.subr.mxu0 0.0
  %1999 = vmatpush1.msra.mxu0 0.0
  %2000 = vmatprep.subr.mxu0 0.0
  %2001 = vmatpush1.msra.mxu0 0.0
  %2002 = vmatprep.subr.mxu0 0.0
  %2003 = vmatpush1.msra.mxu0 0.0
  %2004 = vmatprep.subr.mxu0 0.0
  %2005 = vmatpush1.msra.mxu0 0.0
  %2006 = vmatprep.subr.mxu0 0.0
  %2007 = vmatpush1.msra.mxu0 0.0
  %2008 = vmatprep.mubr.f32.mxu0 0.0
  %v2009 = vand.u32 %v1563, 4294901760
  %v2010 = vsub.f32 %v1563, %v2009
  %v2011 = vand.u32 %v2010, 4294901760
  %2012 = vmatmul.mubr.f32.gmra.mrb[0].mxu0 %v2011
  %v2013 = vpop.f32.mrb[0].mxu0
  %v2014 = vadd.f32 %v1925, %v2013
  %v2015 = vpop.f32.mrb[0].mxu0
  %2016 = vdwg.mxu0
  %2017 = vmatprep.subr.mxu0 0.0
  %v2018 = vand.u32 %v1566, 4294901760
  %v2019 = vsub.f32 %v1566, %v2018
  %v2020 = vand.u32 %v2019, 4294901760
  %2021 = vmatpush1.msra.mxu0 %v2020
  %2022 = vmatprep.subr.mxu0 0.0
  %v2023 = vand.u32 %v1567, 4294901760
  %v2024 = vsub.f32 %v1567, %v2023
  %v2025 = vand.u32 %v2024, 4294901760
  %2026 = vmatpush1.msra.mxu0 %v2025
  %2027 = vmatprep.subr.mxu0 0.0
  %v2028 = vand.u32 %v1568, 4294901760
  %v2029 = vsub.f32 %v1568, %v2028
  %v2030 = vand.u32 %v2029, 4294901760
  %2031 = vmatpush1.msra.mxu0 %v2030
  %2032 = vmatprep.subr.mxu0 0.0
  %v2033 = vand.u32 %v1569, 4294901760
  %v2034 = vsub.f32 %v1569, %v2033
  %v2035 = vand.u32 %v2034, 4294901760
  %2036 = vmatpush1.msra.mxu0 %v2035
  %2037 = vmatprep.subr.mxu0 0.0
  %v2038 = vand.u32 %v1570, 4294901760
  %v2039 = vsub.f32 %v1570, %v2038
  %v2040 = vand.u32 %v2039, 4294901760
  %2041 = vmatpush1.msra.mxu0 %v2040
  %2042 = vmatprep.subr.mxu0 0.0
  %v2043 = vand.u32 %v1571, 4294901760
  %v2044 = vsub.f32 %v1571, %v2043
  %v2045 = vand.u32 %v2044, 4294901760
  %2046 = vmatpush1.msra.mxu0 %v2045
  %2047 = vmatprep.subr.mxu0 0.0
  %v2048 = vand.u32 %v1572, 4294901760
  %v2049 = vsub.f32 %v1572, %v2048
  %v2050 = vand.u32 %v2049, 4294901760
  %2051 = vmatpush1.msra.mxu0 %v2050
  %2052 = vmatprep.subr.mxu0 0.0
  %v2053 = vand.u32 %v1573, 4294901760
  %v2054 = vsub.f32 %v1573, %v2053
  %v2055 = vand.u32 %v2054, 4294901760
  %2056 = vmatpush1.msra.mxu0 %v2055
  %2057 = vmatprep.subr.mxu0 0.0
  %v2058 = vand.u32 %v1574, 4294901760
  %v2059 = vsub.f32 %v1574, %v2058
  %v2060 = vand.u32 %v2059, 4294901760
  %2061 = vmatpush1.msra.mxu0 %v2060
  %2062 = vmatprep.subr.mxu0 0.0
  %v2063 = vand.u32 %v1575, 4294901760
  %v2064 = vsub.f32 %v1575, %v2063
  %v2065 = vand.u32 %v2064, 4294901760
  %2066 = vmatpush1.msra.mxu0 %v2065
  %2067 = vmatprep.subr.mxu0 0.0
  %v2068 = vand.u32 %v1576, 4294901760
  %v2069 = vsub.f32 %v1576, %v2068
  %v2070 = vand.u32 %v2069, 4294901760
  %2071 = vmatpush1.msra.mxu0 %v2070
  %2072 = vmatprep.subr.mxu0 0.0
  %v2073 = vand.u32 %v1577, 4294901760
  %v2074 = vsub.f32 %v1577, %v2073
  %v2075 = vand.u32 %v2074, 4294901760
  %2076 = vmatpush1.msra.mxu0 %v2075
  %2077 = vmatprep.subr.mxu0 0.0
  %v2078 = vand.u32 %v1578, 4294901760
  %v2079 = vsub.f32 %v1578, %v2078
  %v2080 = vand.u32 %v2079, 4294901760
  %2081 = vmatpush1.msra.mxu0 %v2080
  %2082 = vmatprep.subr.mxu0 0.0
  %v2083 = vand.u32 %v1579, 4294901760
  %v2084 = vsub.f32 %v1579, %v2083
  %v2085 = vand.u32 %v2084, 4294901760
  %2086 = vmatpush1.msra.mxu0 %v2085
  %2087 = vmatprep.subr.mxu0 0.0
  %v2088 = vand.u32 %v1580, 4294901760
  %v2089 = vsub.f32 %v1580, %v2088
  %v2090 = vand.u32 %v2089, 4294901760
  %2091 = vmatpush1.msra.mxu0 %v2090
  %2092 = vmatprep.subr.mxu0 0.0
  %v2093 = vand.u32 %v1581, 4294901760
  %v2094 = vsub.f32 %v1581, %v2093
  %v2095 = vand.u32 %v2094, 4294901760
  %2096 = vmatpush1.msra.mxu0 %v2095
  %2097 = vmatprep.subr.mxu0 0.0
  %2098 = vmatpush1.msra.mxu0 0.0
  %2099 = vmatprep.subr.mxu0 0.0
  %2100 = vmatpush1.msra.mxu0 0.0
  %2101 = vmatprep.subr.mxu0 0.0
  %2102 = vmatpush1.msra.mxu0 0.0
  %2103 = vmatprep.subr.mxu0 0.0
  %2104 = vmatpush1.msra.mxu0 0.0
  %2105 = vmatprep.subr.mxu0 0.0
  %2106 = vmatpush1.msra.mxu0 0.0
  %2107 = vmatprep.subr.mxu0 0.0
  %2108 = vmatpush1.msra.mxu0 0.0
  %2109 = vmatprep.subr.mxu0 0.0
  %2110 = vmatpush1.msra.mxu0 0.0
  %2111 = vmatprep.subr.mxu0 0.0
  %2112 = vmatpush1.msra.mxu0 0.0
  %2113 = vmatprep.subr.mxu0 0.0
  %2114 = vmatpush1.msra.mxu0 0.0
  %2115 = vmatprep.subr.mxu0 0.0
  %2116 = vmatpush1.msra.mxu0 0.0
  %2117 = vmatprep.subr.mxu0 0.0
  %2118 = vmatpush1.msra.mxu0 0.0
  %2119 = vmatprep.subr.mxu0 0.0
  %2120 = vmatpush1.msra.mxu0 0.0
  %2121 = vmatprep.subr.mxu0 0.0
  %2122 = vmatpush1.msra.mxu0 0.0
  %2123 = vmatprep.subr.mxu0 0.0
  %2124 = vmatpush1.msra.mxu0 0.0
  %2125 = vmatprep.subr.mxu0 0.0
  %2126 = vmatpush1.msra.mxu0 0.0
  %2127 = vmatprep.subr.mxu0 0.0
  %2128 = vmatpush1.msra.mxu0 0.0
  %2129 = vmatprep.mubr.f32.mxu0 0.0
  %v2130 = vand.u32 %v1563, 4294901760
  %2131 = vmatmul.mubr.f32.gmra.mrb[0].mxu0 %v2130
  %v2132 = vpop.f32.mrb[0].mxu0
  %v2133 = vadd.f32 %v2014, %v2132
  %v2134 = vpop.f32.mrb[0].mxu0
  %2135 = vdwg.mxu0
  %2136 = vmatprep.subr.mxu0 0.0
  %v2137 = vand.u32 %v1566, 4294901760
  %2138 = vmatpush1.msra.mxu0 %v2137
  %2139 = vmatprep.subr.mxu0 0.0
  %v2140 = vand.u32 %v1567, 4294901760
  %2141 = vmatpush1.msra.mxu0 %v2140
  %2142 = vmatprep.subr.mxu0 0.0
  %v2143 = vand.u32 %v1568, 4294901760
  %2144 = vmatpush1.msra.mxu0 %v2143
  %2145 = vmatprep.subr.mxu0 0.0
  %v2146 = vand.u32 %v1569, 4294901760
  %2147 = vmatpush1.msra.mxu0 %v2146
  %2148 = vmatprep.subr.mxu0 0.0
  %v2149 = vand.u32 %v1570, 4294901760
  %2150 = vmatpush1.msra.mxu0 %v2149
  %2151 = vmatprep.subr.mxu0 0.0
  %v2152 = vand.u32 %v1571, 4294901760
  %2153 = vmatpush1.msra.mxu0 %v2152
  %2154 = vmatprep.subr.mxu0 0.0
  %v2155 = vand.u32 %v1572, 4294901760
  %2156 = vmatpush1.msra.mxu0 %v2155
  %2157 = vmatprep.subr.mxu0 0.0
  %v2158 = vand.u32 %v1573, 4294901760
  %2159 = vmatpush1.msra.mxu0 %v2158
  %2160 = vmatprep.subr.mxu0 0.0
  %v2161 = vand.u32 %v1574, 4294901760
  %2162 = vmatpush1.msra.mxu0 %v2161
  %2163 = vmatprep.subr.mxu0 0.0
  %v2164 = vand.u32 %v1575, 4294901760
  %2165 = vmatpush1.msra.mxu0 %v2164
  %2166 = vmatprep.subr.mxu0 0.0
  %v2167 = vand.u32 %v1576, 4294901760
  %2168 = vmatpush1.msra.mxu0 %v2167
  %2169 = vmatprep.subr.mxu0 0.0
  %v2170 = vand.u32 %v1577, 4294901760
  %2171 = vmatpush1.msra.mxu0 %v2170
  %2172 = vmatprep.subr.mxu0 0.0
  %v2173 = vand.u32 %v1578, 4294901760
  %2174 = vmatpush1.msra.mxu0 %v2173
  %2175 = vmatprep.subr.mxu0 0.0
  %v2176 = vand.u32 %v1579, 4294901760
  %2177 = vmatpush1.msra.mxu0 %v2176
  %2178 = vmatprep.subr.mxu0 0.0
  %v2179 = vand.u32 %v1580, 4294901760
  %2180 = vmatpush1.msra.mxu0 %v2179
  %2181 = vmatprep.subr.mxu0 0.0
  %v2182 = vand.u32 %v1581, 4294901760
  %2183 = vmatpush1.msra.mxu0 %v2182
  %2184 = vmatprep.subr.mxu0 0.0
  %2185 = vmatpush1.msra.mxu0 0.0
  %2186 = vmatprep.subr.mxu0 0.0
  %2187 = vmatpush1.msra.mxu0 0.0
  %2188 = vmatprep.subr.mxu0 0.0
  %2189 = vmatpush1.msra.mxu0 0.0
  %2190 = vmatprep.subr.mxu0 0.0
  %2191 = vmatpush1.msra.mxu0 0.0
  %2192 = vmatprep.subr.mxu0 0.0
  %2193 = vmatpush1.msra.mxu0 0.0
  %2194 = vmatprep.subr.mxu0 0.0
  %2195 = vmatpush1.msra.mxu0 0.0
  %2196 = vmatprep.subr.mxu0 0.0
  %2197 = vmatpush1.msra.mxu0 0.0
  %2198 = vmatprep.subr.mxu0 0.0
  %2199 = vmatpush1.msra.mxu0 0.0
  %2200 = vmatprep.subr.mxu0 0.0
  %2201 = vmatpush1.msra.mxu0 0.0
  %2202 = vmatprep.subr.mxu0 0.0
  %2203 = vmatpush1.msra.mxu0 0.0
  %2204 = vmatprep.subr.mxu0 0.0
  %2205 = vmatpush1.msra.mxu0 0.0
  %2206 = vmatprep.subr.mxu0 0.0
  %2207 = vmatpush1.msra.mxu0 0.0
  %2208 = vmatprep.subr.mxu0 0.0
  %2209 = vmatpush1.msra.mxu0 0.0
  %2210 = vmatprep.subr.mxu0 0.0
  %2211 = vmatpush1.msra.mxu0 0.0
  %2212 = vmatprep.subr.mxu0 0.0
  %2213 = vmatpush1.msra.mxu0 0.0
  %2214 = vmatprep.subr.mxu0 0.0
  %2215 = vmatpush1.msra.mxu0 0.0
  %2216 = vmatprep.mubr.f32.mxu0 0.0
  %v2217 = vand.u32 %v1563, 4294901760
  %2218 = vmatmul.mubr.f32.gmra.mrb[0].mxu0 %v2217
  %v2219 = vpop.f32.mrb[0].mxu0
  %v2220 = vadd.f32 %v2133, %v2219
  %v2221 = vpop.f32.mrb[0].mxu0
  %2222 = vdwg.mxu0
  %v2223 = vsub.f32 %v1563, %v2220
  %v2224 = vmul.f32 %v2223, %v2223
  %2225 = vmatprep.subr.mxu0 0.0
  %v2226 = vand.u32 %v1566, 4294901760
  %2227 = vmatpush1.msra.mxu0 %v2226
  %2228 = vmatprep.subr.mxu0 0.0
  %v2229 = vand.u32 %v1567, 4294901760
  %2230 = vmatpush1.msra.mxu0 %v2229
  %2231 = vmatprep.subr.mxu0 0.0
  %v2232 = vand.u32 %v1568, 4294901760
  %2233 = vmatpush1.msra.mxu0 %v2232
  %2234 = vmatprep.subr.mxu0 0.0
  %v2235 = vand.u32 %v1569, 4294901760
  %2236 = vmatpush1.msra.mxu0 %v2235
  %2237 = vmatprep.subr.mxu0 0.0
  %v2238 = vand.u32 %v1570, 4294901760
  %2239 = vmatpush1.msra.mxu0 %v2238
  %2240 = vmatprep.subr.mxu0 0.0
  %v2241 = vand.u32 %v1571, 4294901760
  %2242 = vmatpush1.msra.mxu0 %v2241
  %2243 = vmatprep.subr.mxu0 0.0
  %v2244 = vand.u32 %v1572, 4294901760
  %2245 = vmatpush1.msra.mxu0 %v2244
  %2246 = vmatprep.subr.mxu0 0.0
  %v2247 = vand.u32 %v1573, 4294901760
  %2248 = vmatpush1.msra.mxu0 %v2247
  %2249 = vmatprep.subr.mxu0 0.0
  %v2250 = vand.u32 %v1574, 4294901760
  %2251 = vmatpush1.msra.mxu0 %v2250
  %2252 = vmatprep.subr.mxu0 0.0
  %v2253 = vand.u32 %v1575, 4294901760
  %2254 = vmatpush1.msra.mxu0 %v2253
  %2255 = vmatprep.subr.mxu0 0.0
  %v2256 = vand.u32 %v1576, 4294901760
  %2257 = vmatpush1.msra.mxu0 %v2256
  %2258 = vmatprep.subr.mxu0 0.0
  %v2259 = vand.u32 %v1577, 4294901760
  %2260 = vmatpush1.msra.mxu0 %v2259
  %2261 = vmatprep.subr.mxu0 0.0
  %v2262 = vand.u32 %v1578, 4294901760
  %2263 = vmatpush1.msra.mxu0 %v2262
  %2264 = vmatprep.subr.mxu0 0.0
  %v2265 = vand.u32 %v1579, 4294901760
  %2266 = vmatpush1.msra.mxu0 %v2265
  %2267 = vmatprep.subr.mxu0 0.0
  %v2268 = vand.u32 %v1580, 4294901760
  %2269 = vmatpush1.msra.mxu0 %v2268
  %2270 = vmatprep.subr.mxu0 0.0
  %v2271 = vand.u32 %v1581, 4294901760
  %2272 = vmatpush1.msra.mxu0 %v2271
  %2273 = vmatprep.subr.mxu0 0.0
  %2274 = vmatpush1.msra.mxu0 0.0
  %2275 = vmatprep.subr.mxu0 0.0
  %2276 = vmatpush1.msra.mxu0 0.0
  %2277 = vmatprep.subr.mxu0 0.0
  %2278 = vmatpush1.msra.mxu0 0.0
  %2279 = vmatprep.subr.mxu0 0.0
  %2280 = vmatpush1.msra.mxu0 0.0
  %2281 = vmatprep.subr.mxu0 0.0
  %2282 = vmatpush1.msra.mxu0 0.0
  %2283 = vmatprep.subr.mxu0 0.0
  %2284 = vmatpush1.msra.mxu0 0.0
  %2285 = vmatprep.subr.mxu0 0.0
  %2286 = vmatpush1.msra.mxu0 0.0
  %2287 = vmatprep.subr.mxu0 0.0
  %2288 = vmatpush1.msra.mxu0 0.0
  %2289 = vmatprep.subr.mxu0 0.0
  %2290 = vmatpush1.msra.mxu0 0.0
  %2291 = vmatprep.subr.mxu0 0.0
  %2292 = vmatpush1.msra.mxu0 0.0
  %2293 = vmatprep.subr.mxu0 0.0
  %2294 = vmatpush1.msra.mxu0 0.0
  %2295 = vmatprep.subr.mxu0 0.0
  %2296 = vmatpush1.msra.mxu0 0.0
  %2297 = vmatprep.subr.mxu0 0.0
  %2298 = vmatpush1.msra.mxu0 0.0
  %2299 = vmatprep.subr.mxu0 0.0
  %2300 = vmatpush1.msra.mxu0 0.0
  %2301 = vmatprep.subr.mxu0 0.0
  %2302 = vmatpush1.msra.mxu0 0.0
  %2303 = vmatprep.subr.mxu0 0.0
  %2304 = vmatpush1.msra.mxu0 0.0
  %2305 = vmatprep.mubr.f32.mxu0 0.0
  %v2306 = vand.u32 %v2224, 4294901760
  %v2307 = vsub.f32 %v2224, %v2306
  %v2308 = vand.u32 %v2307, 4294901760
  %v2309 = vsub.f32 %v2307, %v2308
  %v2310 = vand.u32 %v2309, 4294901760
  %2311 = vmatmul.mubr.f32.gmra.mrb[0].mxu0 %v2310
  %v2312 = vpop.f32.mrb[0].mxu0
  %v2313 = vadd.f32 1e-05, %v2312
  %v2314 = vpop.f32.mrb[0].mxu0
  %2315 = vdwg.mxu0
  %2316 = vmatprep.subr.mxu0 0.0
  %v2317 = vand.u32 %v1566, 4294901760
  %v2318 = vsub.f32 %v1566, %v2317
  %v2319 = vand.u32 %v2318, 4294901760
  %v2320 = vsub.f32 %v2318, %v2319
  %v2321 = vand.u32 %v2320, 4294901760
  %2322 = vmatpush1.msra.mxu0 %v2321
  %2323 = vmatprep.subr.mxu0 0.0
  %v2324 = vand.u32 %v1567, 4294901760
  %v2325 = vsub.f32 %v1567, %v2324
  %v2326 = vand.u32 %v2325, 4294901760
  %v2327 = vsub.f32 %v2325, %v2326
  %v2328 = vand.u32 %v2327, 4294901760
  %2329 = vmatpush1.msra.mxu0 %v2328
  %2330 = vmatprep.subr.mxu0 0.0
  %v2331 = vand.u32 %v1568, 4294901760
  %v2332 = vsub.f32 %v1568, %v2331
  %v2333 = vand.u32 %v2332, 4294901760
  %v2334 = vsub.f32 %v2332, %v2333
  %v2335 = vand.u32 %v2334, 4294901760
  %2336 = vmatpush1.msra.mxu0 %v2335
  %2337 = vmatprep.subr.mxu0 0.0
  %v2338 = vand.u32 %v1569, 4294901760
  %v2339 = vsub.f32 %v1569, %v2338
  %v2340 = vand.u32 %v2339, 4294901760
  %v2341 = vsub.f32 %v2339, %v2340
  %v2342 = vand.u32 %v2341, 4294901760
  %2343 = vmatpush1.msra.mxu0 %v2342
  %2344 = vmatprep.subr.mxu0 0.0
  %v2345 = vand.u32 %v1570, 4294901760
  %v2346 = vsub.f32 %v1570, %v2345
  %v2347 = vand.u32 %v2346, 4294901760
  %v2348 = vsub.f32 %v2346, %v2347
  %v2349 = vand.u32 %v2348, 4294901760
  %2350 = vmatpush1.msra.mxu0 %v2349
  %2351 = vmatprep.subr.mxu0 0.0
  %v2352 = vand.u32 %v1571, 4294901760
  %v2353 = vsub.f32 %v1571, %v2352
  %v2354 = vand.u32 %v2353, 4294901760
  %v2355 = vsub.f32 %v2353, %v2354
  %v2356 = vand.u32 %v2355, 4294901760
  %2357 = vmatpush1.msra.mxu0 %v2356
  %2358 = vmatprep.subr.mxu0 0.0
  %v2359 = vand.u32 %v1572, 4294901760
  %v2360 = vsub.f32 %v1572, %v2359
  %v2361 = vand.u32 %v2360, 4294901760
  %v2362 = vsub.f32 %v2360, %v2361
  %v2363 = vand.u32 %v2362, 4294901760
  %2364 = vmatpush1.msra.mxu0 %v2363
  %2365 = vmatprep.subr.mxu0 0.0
  %v2366 = vand.u32 %v1573, 4294901760
  %v2367 = vsub.f32 %v1573, %v2366
  %v2368 = vand.u32 %v2367, 4294901760
  %v2369 = vsub.f32 %v2367, %v2368
  %v2370 = vand.u32 %v2369, 4294901760
  %2371 = vmatpush1.msra.mxu0 %v2370
  %2372 = vmatprep.subr.mxu0 0.0
  %v2373 = vand.u32 %v1574, 4294901760
  %v2374 = vsub.f32 %v1574, %v2373
  %v2375 = vand.u32 %v2374, 4294901760
  %v2376 = vsub.f32 %v2374, %v2375
  %v2377 = vand.u32 %v2376, 4294901760
  %2378 = vmatpush1.msra.mxu0 %v2377
  %2379 = vmatprep.subr.mxu0 0.0
  %v2380 = vand.u32 %v1575, 4294901760
  %v2381 = vsub.f32 %v1575, %v2380
  %v2382 = vand.u32 %v2381, 4294901760
  %v2383 = vsub.f32 %v2381, %v2382
  %v2384 = vand.u32 %v2383, 4294901760
  %2385 = vmatpush1.msra.mxu0 %v2384
  %2386 = vmatprep.subr.mxu0 0.0
  %v2387 = vand.u32 %v1576, 4294901760
  %v2388 = vsub.f32 %v1576, %v2387
  %v2389 = vand.u32 %v2388, 4294901760
  %v2390 = vsub.f32 %v2388, %v2389
  %v2391 = vand.u32 %v2390, 4294901760
  %2392 = vmatpush1.msra.mxu0 %v2391
  %2393 = vmatprep.subr.mxu0 0.0
  %v2394 = vand.u32 %v1577, 4294901760
  %v2395 = vsub.f32 %v1577, %v2394
  %v2396 = vand.u32 %v2395, 4294901760
  %v2397 = vsub.f32 %v2395, %v2396
  %v2398 = vand.u32 %v2397, 4294901760
  %2399 = vmatpush1.msra.mxu0 %v2398
  %2400 = vmatprep.subr.mxu0 0.0
  %v2401 = vand.u32 %v1578, 4294901760
  %v2402 = vsub.f32 %v1578, %v2401
  %v2403 = vand.u32 %v2402, 4294901760
  %v2404 = vsub.f32 %v2402, %v2403
  %v2405 = vand.u32 %v2404, 4294901760
  %2406 = vmatpush1.msra.mxu0 %v2405
  %2407 = vmatprep.subr.mxu0 0.0
  %v2408 = vand.u32 %v1579, 4294901760
  %v2409 = vsub.f32 %v1579, %v2408
  %v2410 = vand.u32 %v2409, 4294901760
  %v2411 = vsub.f32 %v2409, %v2410
  %v2412 = vand.u32 %v2411, 4294901760
  %2413 = vmatpush1.msra.mxu0 %v2412
  %2414 = vmatprep.subr.mxu0 0.0
  %v2415 = vand.u32 %v1580, 4294901760
  %v2416 = vsub.f32 %v1580, %v2415
  %v2417 = vand.u32 %v2416, 4294901760
  %v2418 = vsub.f32 %v2416, %v2417
  %v2419 = vand.u32 %v2418, 4294901760
  %2420 = vmatpush1.msra.mxu0 %v2419
  %2421 = vmatprep.subr.mxu0 0.0
  %v2422 = vand.u32 %v1581, 4294901760
  %v2423 = vsub.f32 %v1581, %v2422
  %v2424 = vand.u32 %v2423, 4294901760
  %v2425 = vsub.f32 %v2423, %v2424
  %v2426 = vand.u32 %v2425, 4294901760
  %2427 = vmatpush1.msra.mxu0 %v2426
  %2428 = vmatprep.subr.mxu0 0.0
  %2429 = vmatpush1.msra.mxu0 0.0
  %2430 = vmatprep.subr.mxu0 0.0
  %2431 = vmatpush1.msra.mxu0 0.0
  %2432 = vmatprep.subr.mxu0 0.0
  %2433 = vmatpush1.msra.mxu0 0.0
  %2434 = vmatprep.subr.mxu0 0.0
  %2435 = vmatpush1.msra.mxu0 0.0
  %2436 = vmatprep.subr.mxu0 0.0
  %2437 = vmatpush1.msra.mxu0 0.0
  %2438 = vmatprep.subr.mxu0 0.0
  %2439 = vmatpush1.msra.mxu0 0.0
  %2440 = vmatprep.subr.mxu0 0.0
  %2441 = vmatpush1.msra.mxu0 0.0
  %2442 = vmatprep.subr.mxu0 0.0
  %2443 = vmatpush1.msra.mxu0 0.0
  %2444 = vmatprep.subr.mxu0 0.0
  %2445 = vmatpush1.msra.mxu0 0.0
  %2446 = vmatprep.subr.mxu0 0.0
  %2447 = vmatpush1.msra.mxu0 0.0
  %2448 = vmatprep.subr.mxu0 0.0
  %2449 = vmatpush1.msra.mxu0 0.0
  %2450 = vmatprep.subr.mxu0 0.0
  %2451 = vmatpush1.msra.mxu0 0.0
  %2452 = vmatprep.subr.mxu0 0.0
  %2453 = vmatpush1.msra.mxu0 0.0
  %2454 = vmatprep.subr.mxu0 0.0
  %2455 = vmatpush1.msra.mxu0 0.0
  %2456 = vmatprep.subr.mxu0 0.0
  %2457 = vmatpush1.msra.mxu0 0.0
  %2458 = vmatprep.subr.mxu0 0.0
  %2459 = vmatpush1.msra.mxu0 0.0
  %2460 = vmatprep.mubr.f32.mxu0 0.0
  %v2461 = vand.u32 %v2224, 4294901760
  %2462 = vmatmul.mubr.f32.gmra.mrb[0].mxu0 %v2461
  %v2463 = vpop.f32.mrb[0].mxu0
  %v2464 = vadd.f32 %v2313, %v2463
  %v2465 = vpop.f32.mrb[0].mxu0
  %2466 = vdwg.mxu0
  %2467 = vmatprep.subr.mxu0 0.0
  %v2468 = vand.u32 %v1566, 4294901760
  %v2469 = vsub.f32 %v1566, %v2468
  %2470 = vmatpush1.msra.mxu0 %v2469
  %2471 = vmatprep.subr.mxu0 0.0
  %v2472 = vand.u32 %v1567, 4294901760
  %v2473 = vsub.f32 %v1567, %v2472
  %2474 = vmatpush1.msra.mxu0 %v2473
  %2475 = vmatprep.subr.mxu0 0.0
  %v2476 = vand.u32 %v1568, 4294901760
  %v2477 = vsub.f32 %v1568, %v2476
  %2478 = vmatpush1.msra.mxu0 %v2477
  %2479 = vmatprep.subr.mxu0 0.0
  %v2480 = vand.u32 %v1569, 4294901760
  %v2481 = vsub.f32 %v1569, %v2480
  %2482 = vmatpush1.msra.mxu0 %v2481
  %2483 = vmatprep.subr.mxu0 0.0
  %v2484 = vand.u32 %v1570, 4294901760
  %v2485 = vsub.f32 %v1570, %v2484
  %2486 = vmatpush1.msra.mxu0 %v2485
  %2487 = vmatprep.subr.mxu0 0.0
  %v2488 = vand.u32 %v1571, 4294901760
  %v2489 = vsub.f32 %v1571, %v2488
  %2490 = vmatpush1.msra.mxu0 %v2489
  %2491 = vmatprep.subr.mxu0 0.0
  %v2492 = vand.u32 %v1572, 4294901760
  %v2493 = vsub.f32 %v1572, %v2492
  %2494 = vmatpush1.msra.mxu0 %v2493
  %2495 = vmatprep.subr.mxu0 0.0
  %v2496 = vand.u32 %v1573, 4294901760
  %v2497 = vsub.f32 %v1573, %v2496
  %2498 = vmatpush1.msra.mxu0 %v2497
  %2499 = vmatprep.subr.mxu0 0.0
  %v2500 = vand.u32 %v1574, 4294901760
  %v2501 = vsub.f32 %v1574, %v2500
  %2502 = vmatpush1.msra.mxu0 %v2501
  %2503 = vmatprep.subr.mxu0 0.0
  %v2504 = vand.u32 %v1575, 4294901760
  %v2505 = vsub.f32 %v1575, %v2504
  %2506 = vmatpush1.msra.mxu0 %v2505
  %2507 = vmatprep.subr.mxu0 0.0
  %v2508 = vand.u32 %v1576, 4294901760
  %v2509 = vsub.f32 %v1576, %v2508
  %2510 = vmatpush1.msra.mxu0 %v2509
  %2511 = vmatprep.subr.mxu0 0.0
  %v2512 = vand.u32 %v1577, 4294901760
  %v2513 = vsub.f32 %v1577, %v2512
  %2514 = vmatpush1.msra.mxu0 %v2513
  %2515 = vmatprep.subr.mxu0 0.0
  %v2516 = vand.u32 %v1578, 4294901760
  %v2517 = vsub.f32 %v1578, %v2516
  %2518 = vmatpush1.msra.mxu0 %v2517
  %2519 = vmatprep.subr.mxu0 0.0
  %v2520 = vand.u32 %v1579, 4294901760
  %v2521 = vsub.f32 %v1579, %v2520
  %2522 = vmatpush1.msra.mxu0 %v2521
  %2523 = vmatprep.subr.mxu0 0.0
  %v2524 = vand.u32 %v1580, 4294901760
  %v2525 = vsub.f32 %v1580, %v2524
  %2526 = vmatpush1.msra.mxu0 %v2525
  %2527 = vmatprep.subr.mxu0 0.0
  %v2528 = vand.u32 %v1581, 4294901760
  %v2529 = vsub.f32 %v1581, %v2528
  %2530 = vmatpush1.msra.mxu0 %v2529
  %2531 = vmatprep.subr.mxu0 0.0
  %2532 = vmatpush1.msra.mxu0 0.0
  %2533 = vmatprep.subr.mxu0 0.0
  %2534 = vmatpush1.msra.mxu0 0.0
  %2535 = vmatprep.subr.mxu0 0.0
  %2536 = vmatpush1.msra.mxu0 0.0
  %2537 = vmatprep.subr.mxu0 0.0
  %2538 = vmatpush1.msra.mxu0 0.0
  %2539 = vmatprep.subr.mxu0 0.0
  %2540 = vmatpush1.msra.mxu0 0.0
  %2541 = vmatprep.subr.mxu0 0.0
  %2542 = vmatpush1.msra.mxu0 0.0
  %2543 = vmatprep.subr.mxu0 0.0
  %2544 = vmatpush1.msra.mxu0 0.0
  %2545 = vmatprep.subr.mxu0 0.0
  %2546 = vmatpush1.msra.mxu0 0.0
  %2547 = vmatprep.subr.mxu0 0.0
  %2548 = vmatpush1.msra.mxu0 0.0
  %2549 = vmatprep.subr.mxu0 0.0
  %2550 = vmatpush1.msra.mxu0 0.0
  %2551 = vmatprep.subr.mxu0 0.0
  %2552 = vmatpush1.msra.mxu0 0.0
  %2553 = vmatprep.subr.mxu0 0.0
  %2554 = vmatpush1.msra.mxu0 0.0
  %2555 = vmatprep.subr.mxu0 0.0
  %2556 = vmatpush1.msra.mxu0 0.0
  %2557 = vmatprep.subr.mxu0 0.0
  %2558 = vmatpush1.msra.mxu0 0.0
  %2559 = vmatprep.subr.mxu0 0.0
  %2560 = vmatpush1.msra.mxu0 0.0
  %2561 = vmatprep.subr.mxu0 0.0
  %2562 = vmatpush1.msra.mxu0 0.0
  %2563 = vmatprep.mubr.f32.mxu0 0.0
  %v2564 = vand.u32 %v2224, 4294901760
  %v2565 = vsub.f32 %v2224, %v2564
  %2566 = vmatmul.mubr.f32.gmra.mrb[0].mxu0 %v2565
  %v2567 = vpop.f32.mrb[0].mxu0
  %v2568 = vadd.f32 %v2464, %v2567
  %v2569 = vpop.f32.mrb[0].mxu0
  %2570 = vdwg.mxu0
  %2571 = vmatprep.subr.mxu0 0.0
  %v2572 = vand.u32 %v1566, 4294901760
  %2573 = vmatpush1.msra.mxu0 %v2572
  %2574 = vmatprep.subr.mxu0 0.0
  %v2575 = vand.u32 %v1567, 4294901760
  %2576 = vmatpush1.msra.mxu0 %v2575
  %2577 = vmatprep.subr.mxu0 0.0
  %v2578 = vand.u32 %v1568, 4294901760
  %2579 = vmatpush1.msra.mxu0 %v2578
  %2580 = vmatprep.subr.mxu0 0.0
  %v2581 = vand.u32 %v1569, 4294901760
  %2582 = vmatpush1.msra.mxu0 %v2581
  %2583 = vmatprep.subr.mxu0 0.0
  %v2584 = vand.u32 %v1570, 4294901760
  %2585 = vmatpush1.msra.mxu0 %v2584
  %2586 = vmatprep.subr.mxu0 0.0
  %v2587 = vand.u32 %v1571, 4294901760
  %2588 = vmatpush1.msra.mxu0 %v2587
  %2589 = vmatprep.subr.mxu0 0.0
  %v2590 = vand.u32 %v1572, 4294901760
  %2591 = vmatpush1.msra.mxu0 %v2590
  %2592 = vmatprep.subr.mxu0 0.0
  %v2593 = vand.u32 %v1573, 4294901760
  %2594 = vmatpush1.msra.mxu0 %v2593
  %2595 = vmatprep.subr.mxu0 0.0
  %v2596 = vand.u32 %v1574, 4294901760
  %2597 = vmatpush1.msra.mxu0 %v2596
  %2598 = vmatprep.subr.mxu0 0.0
  %v2599 = vand.u32 %v1575, 4294901760
  %2600 = vmatpush1.msra.mxu0 %v2599
  %2601 = vmatprep.subr.mxu0 0.0
  %v2602 = vand.u32 %v1576, 4294901760
  %2603 = vmatpush1.msra.mxu0 %v2602
  %2604 = vmatprep.subr.mxu0 0.0
  %v2605 = vand.u32 %v1577, 4294901760
  %2606 = vmatpush1.msra.mxu0 %v2605
  %2607 = vmatprep.subr.mxu0 0.0
  %v2608 = vand.u32 %v1578, 4294901760
  %2609 = vmatpush1.msra.mxu0 %v2608
  %2610 = vmatprep.subr.mxu0 0.0
  %v2611 = vand.u32 %v1579, 4294901760
  %2612 = vmatpush1.msra.mxu0 %v2611
  %2613 = vmatprep.subr.mxu0 0.0
  %v2614 = vand.u32 %v1580, 4294901760
  %2615 = vmatpush1.msra.mxu0 %v2614
  %2616 = vmatprep.subr.mxu0 0.0
  %v2617 = vand.u32 %v1581, 4294901760
  %2618 = vmatpush1.msra.mxu0 %v2617
  %2619 = vmatprep.subr.mxu0 0.0
  %2620 = vmatpush1.msra.mxu0 0.0
  %2621 = vmatprep.subr.mxu0 0.0
  %2622 = vmatpush1.msra.mxu0 0.0
  %2623 = vmatprep.subr.mxu0 0.0
  %2624 = vmatpush1.msra.mxu0 0.0
  %2625 = vmatprep.subr.mxu0 0.0
  %2626 = vmatpush1.msra.mxu0 0.0
  %2627 = vmatprep.subr.mxu0 0.0
  %2628 = vmatpush1.msra.mxu0 0.0
  %2629 = vmatprep.subr.mxu0 0.0
  %2630 = vmatpush1.msra.mxu0 0.0
  %2631 = vmatprep.subr.mxu0 0.0
  %2632 = vmatpush1.msra.mxu0 0.0
  %2633 = vmatprep.subr.mxu0 0.0
  %2634 = vmatpush1.msra.mxu0 0.0
  %2635 = vmatprep.subr.mxu0 0.0
  %2636 = vmatpush1.msra.mxu0 0.0
  %2637 = vmatprep.subr.mxu0 0.0
  %2638 = vmatpush1.msra.mxu0 0.0
  %2639 = vmatprep.subr.mxu0 0.0
  %2640 = vmatpush1.msra.mxu0 0.0
  %2641 = vmatprep.subr.mxu0 0.0
  %2642 = vmatpush1.msra.mxu0 0.0
  %2643 = vmatprep.subr.mxu0 0.0
  %2644 = vmatpush1.msra.mxu0 0.0
  %2645 = vmatprep.subr.mxu0 0.0
  %2646 = vmatpush1.msra.mxu0 0.0
  %2647 = vmatprep.subr.mxu0 0.0
  %2648 = vmatpush1.msra.mxu0 0.0
  %2649 = vmatprep.subr.mxu0 0.0
  %2650 = vmatpush1.msra.mxu0 0.0
  %2651 = vmatprep.mubr.f32.mxu0 0.0
  %v2652 = vand.u32 %v2224, 4294901760
  %v2653 = vsub.f32 %v2224, %v2652
  %v2654 = vand.u32 %v2653, 4294901760
  %2655 = vmatmul.mubr.f32.gmra.mrb[0].mxu0 %v2654
  %v2656 = vpop.f32.mrb[0].mxu0
  %v2657 = vadd.f32 %v2568, %v2656
  %v2658 = vpop.f32.mrb[0].mxu0
  %2659 = vdwg.mxu0
  %2660 = vmatprep.subr.mxu0 0.0
  %v2661 = vand.u32 %v1566, 4294901760
  %v2662 = vsub.f32 %v1566, %v2661
  %v2663 = vand.u32 %v2662, 4294901760
  %2664 = vmatpush1.msra.mxu0 %v2663
  %2665 = vmatprep.subr.mxu0 0.0
  %v2666 = vand.u32 %v1567, 4294901760
  %v2667 = vsub.f32 %v1567, %v2666
  %v2668 = vand.u32 %v2667, 4294901760
  %2669 = vmatpush1.msra.mxu0 %v2668
  %2670 = vmatprep.subr.mxu0 0.0
  %v2671 = vand.u32 %v1568, 4294901760
  %v2672 = vsub.f32 %v1568, %v2671
  %v2673 = vand.u32 %v2672, 4294901760
  %2674 = vmatpush1.msra.mxu0 %v2673
  %2675 = vmatprep.subr.mxu0 0.0
  %v2676 = vand.u32 %v1569, 4294901760
  %v2677 = vsub.f32 %v1569, %v2676
  %v2678 = vand.u32 %v2677, 4294901760
  %2679 = vmatpush1.msra.mxu0 %v2678
  %2680 = vmatprep.subr.mxu0 0.0
  %v2681 = vand.u32 %v1570, 4294901760
  %v2682 = vsub.f32 %v1570, %v2681
  %v2683 = vand.u32 %v2682, 4294901760
  %2684 = vmatpush1.msra.mxu0 %v2683
  %2685 = vmatprep.subr.mxu0 0.0
  %v2686 = vand.u32 %v1571, 4294901760
  %v2687 = vsub.f32 %v1571, %v2686
  %v2688 = vand.u32 %v2687, 4294901760
  %2689 = vmatpush1.msra.mxu0 %v2688
  %2690 = vmatprep.subr.mxu0 0.0
  %v2691 = vand.u32 %v1572, 4294901760
  %v2692 = vsub.f32 %v1572, %v2691
  %v2693 = vand.u32 %v2692, 4294901760
  %2694 = vmatpush1.msra.mxu0 %v2693
  %2695 = vmatprep.subr.mxu0 0.0
  %v2696 = vand.u32 %v1573, 4294901760
  %v2697 = vsub.f32 %v1573, %v2696
  %v2698 = vand.u32 %v2697, 4294901760
  %2699 = vmatpush1.msra.mxu0 %v2698
  %2700 = vmatprep.subr.mxu0 0.0
  %v2701 = vand.u32 %v1574, 4294901760
  %v2702 = vsub.f32 %v1574, %v2701
  %v2703 = vand.u32 %v2702, 4294901760
  %2704 = vmatpush1.msra.mxu0 %v2703
  %2705 = vmatprep.subr.mxu0 0.0
  %v2706 = vand.u32 %v1575, 4294901760
  %v2707 = vsub.f32 %v1575, %v2706
  %v2708 = vand.u32 %v2707, 4294901760
  %2709 = vmatpush1.msra.mxu0 %v2708
  %2710 = vmatprep.subr.mxu0 0.0
  %v2711 = vand.u32 %v1576, 4294901760
  %v2712 = vsub.f32 %v1576, %v2711
  %v2713 = vand.u32 %v2712, 4294901760
  %2714 = vmatpush1.msra.mxu0 %v2713
  %2715 = vmatprep.subr.mxu0 0.0
  %v2716 = vand.u32 %v1577, 4294901760
  %v2717 = vsub.f32 %v1577, %v2716
  %v2718 = vand.u32 %v2717, 4294901760
  %2719 = vmatpush1.msra.mxu0 %v2718
  %2720 = vmatprep.subr.mxu0 0.0
  %v2721 = vand.u32 %v1578, 4294901760
  %v2722 = vsub.f32 %v1578, %v2721
  %v2723 = vand.u32 %v2722, 4294901760
  %2724 = vmatpush1.msra.mxu0 %v2723
  %2725 = vmatprep.subr.mxu0 0.0
  %v2726 = vand.u32 %v1579, 4294901760
  %v2727 = vsub.f32 %v1579, %v2726
  %v2728 = vand.u32 %v2727, 4294901760
  %2729 = vmatpush1.msra.mxu0 %v2728
  %2730 = vmatprep.subr.mxu0 0.0
  %v2731 = vand.u32 %v1580, 4294901760
  %v2732 = vsub.f32 %v1580, %v2731
  %v2733 = vand.u32 %v2732, 4294901760
  %2734 = vmatpush1.msra.mxu0 %v2733
  %2735 = vmatprep.subr.mxu0 0.0
  %v2736 = vand.u32 %v1581, 4294901760
  %v2737 = vsub.f32 %v1581, %v2736
  %v2738 = vand.u32 %v2737, 4294901760
  %2739 = vmatpush1.msra.mxu0 %v2738
  %2740 = vmatprep.subr.mxu0 0.0
  %2741 = vmatpush1.msra.mxu0 0.0
  %2742 = vmatprep.subr.mxu0 0.0
  %2743 = vmatpush1.msra.mxu0 0.0
  %2744 = vmatprep.subr.mxu0 0.0
  %2745 = vmatpush1.msra.mxu0 0.0
  %2746 = vmatprep.subr.mxu0 0.0
  %2747 = vmatpush1.msra.mxu0 0.0
  %2748 = vmatprep.subr.mxu0 0.0
  %2749 = vmatpush1.msra.mxu0 0.0
  %2750 = vmatprep.subr.mxu0 0.0
  %2751 = vmatpush1.msra.mxu0 0.0
  %2752 = vmatprep.subr.mxu0 0.0
  %2753 = vmatpush1.msra.mxu0 0.0
  %2754 = vmatprep.subr.mxu0 0.0
  %2755 = vmatpush1.msra.mxu0 0.0
  %2756 = vmatprep.subr.mxu0 0.0
  %2757 = vmatpush1.msra.mxu0 0.0
  %2758 = vmatprep.subr.mxu0 0.0
  %2759 = vmatpush1.msra.mxu0 0.0
  %2760 = vmatprep.subr.mxu0 0.0
  %2761 = vmatpush1.msra.mxu0 0.0
  %2762 = vmatprep.subr.mxu0 0.0
  %2763 = vmatpush1.msra.mxu0 0.0
  %2764 = vmatprep.subr.mxu0 0.0
  %2765 = vmatpush1.msra.mxu0 0.0
  %2766 = vmatprep.subr.mxu0 0.0
  %2767 = vmatpush1.msra.mxu0 0.0
  %2768 = vmatprep.subr.mxu0 0.0
  %2769 = vmatpush1.msra.mxu0 0.0
  %2770 = vmatprep.subr.mxu0 0.0
  %2771 = vmatpush1.msra.mxu0 0.0
  %2772 = vmatprep.mubr.f32.mxu0 0.0
  %v2773 = vand.u32 %v2224, 4294901760
  %2774 = vmatmul.mubr.f32.gmra.mrb[0].mxu0 %v2773
  %v2775 = vpop.f32.mrb[0].mxu0
  %v2776 = vadd.f32 %v2657, %v2775
  %v2777 = vpop.f32.mrb[0].mxu0
  %2778 = vdwg.mxu0
  %2779 = vmatprep.subr.mxu0 0.0
  %v2780 = vand.u32 %v1566, 4294901760
  %2781 = vmatpush1.msra.mxu0 %v2780
  %2782 = vmatprep.subr.mxu0 0.0
  %v2783 = vand.u32 %v1567, 4294901760
  %2784 = vmatpush1.msra.mxu0 %v2783
  %2785 = vmatprep.subr.mxu0 0.0
  %v2786 = vand.u32 %v1568, 4294901760
  %2787 = vmatpush1.msra.mxu0 %v2786
  %2788 = vmatprep.subr.mxu0 0.0
  %v2789 = vand.u32 %v1569, 4294901760
  %2790 = vmatpush1.msra.mxu0 %v2789
  %2791 = vmatprep.subr.mxu0 0.0
  %v2792 = vand.u32 %v1570, 4294901760
  %2793 = vmatpush1.msra.mxu0 %v2792
  %2794 = vmatprep.subr.mxu0 0.0
  %v2795 = vand.u32 %v1571, 4294901760
  %2796 = vmatpush1.msra.mxu0 %v2795
  %2797 = vmatprep.subr.mxu0 0.0
  %v2798 = vand.u32 %v1572, 4294901760
  %2799 = vmatpush1.msra.mxu0 %v2798
  %2800 = vmatprep.subr.mxu0 0.0
  %v2801 = vand.u32 %v1573, 4294901760
  %2802 = vmatpush1.msra.mxu0 %v2801
  %2803 = vmatprep.subr.mxu0 0.0
  %v2804 = vand.u32 %v1574, 4294901760
  %2805 = vmatpush1.msra.mxu0 %v2804
  %2806 = vmatprep.subr.mxu0 0.0
  %v2807 = vand.u32 %v1575, 4294901760
  %2808 = vmatpush1.msra.mxu0 %v2807
  %2809 = vmatprep.subr.mxu0 0.0
  %v2810 = vand.u32 %v1576, 4294901760
  %2811 = vmatpush1.msra.mxu0 %v2810
  %2812 = vmatprep.subr.mxu0 0.0
  %v2813 = vand.u32 %v1577, 4294901760
  %2814 = vmatpush1.msra.mxu0 %v2813
  %2815 = vmatprep.subr.mxu0 0.0
  %v2816 = vand.u32 %v1578, 4294901760
  %2817 = vmatpush1.msra.mxu0 %v2816
  %2818 = vmatprep.subr.mxu0 0.0
  %v2819 = vand.u32 %v1579, 4294901760
  %2820 = vmatpush1.msra.mxu0 %v2819
  %2821 = vmatprep.subr.mxu0 0.0
  %v2822 = vand.u32 %v1580, 4294901760
  %2823 = vmatpush1.msra.mxu0 %v2822
  %2824 = vmatprep.subr.mxu0 0.0
  %v2825 = vand.u32 %v1581, 4294901760
  %2826 = vmatpush1.msra.mxu0 %v2825
  %2827 = vmatprep.subr.mxu0 0.0
  %2828 = vmatpush1.msra.mxu0 0.0
  %2829 = vmatprep.subr.mxu0 0.0
  %2830 = vmatpush1.msra.mxu0 0.0
  %2831 = vmatprep.subr.mxu0 0.0
  %2832 = vmatpush1.msra.mxu0 0.0
  %2833 = vmatprep.subr.mxu0 0.0
  %2834 = vmatpush1.msra.mxu0 0.0
  %2835 = vmatprep.subr.mxu0 0.0
  %2836 = vmatpush1.msra.mxu0 0.0
  %2837 = vmatprep.subr.mxu0 0.0
  %2838 = vmatpush1.msra.mxu0 0.0
  %2839 = vmatprep.subr.mxu0 0.0
  %2840 = vmatpush1.msra.mxu0 0.0
  %2841 = vmatprep.subr.mxu0 0.0
  %2842 = vmatpush1.msra.mxu0 0.0
  %2843 = vmatprep.subr.mxu0 0.0
  %2844 = vmatpush1.msra.mxu0 0.0
  %2845 = vmatprep.subr.mxu0 0.0
  %2846 = vmatpush1.msra.mxu0 0.0
  %2847 = vmatprep.subr.mxu0 0.0
  %2848 = vmatpush1.msra.mxu0 0.0
  %2849 = vmatprep.subr.mxu0 0.0
  %2850 = vmatpush1.msra.mxu0 0.0
  %2851 = vmatprep.subr.mxu0 0.0
  %2852 = vmatpush1.msra.mxu0 0.0
  %2853 = vmatprep.subr.mxu0 0.0
  %2854 = vmatpush1.msra.mxu0 0.0
  %2855 = vmatprep.subr.mxu0 0.0
  %2856 = vmatpush1.msra.mxu0 0.0
  %2857 = vmatprep.subr.mxu0 0.0
  %2858 = vmatpush1.msra.mxu0 0.0
  %2859 = vmatprep.mubr.f32.mxu0 0.0
  %v2860 = vand.u32 %v2224, 4294901760
  %2861 = vmatmul.mubr.f32.gmra.mrb[0].mxu0 %v2860
  %v2862 = vpop.f32.mrb[0].mxu0
  %v2863 = vadd.f32 %v2776, %v2862
  %v2864 = vpop.f32.mrb[0].mxu0
  %2865 = vdwg.mxu0
  %v2866 = vrsqrt.pop %v2863
  %v2867 = vmul.f32 %v2223, %v2866
  %v2868 = vld [vmem:[%s7] sm:$0x1]
  %v2870 = vlaneseq
  %v2871 = vshrl.u32 %v2870, 7
  %v2872 = vsub.s32 0, %v2871
  %v2873 = vrot.slane %v2868, %v2872
  %v2875 = vmul.f32 %v2867, %v2873
  %v2876 = vld [vmem:[%s8] sm:$0x1]
  %v2878 = vlaneseq
  %v2879 = vshrl.u32 %v2878, 7
  %v2880 = vsub.s32 0, %v2879
  %v2881 = vrot.slane %v2876, %v2880
  %v2883 = vadd.f32 %v2875, %v2881
  %2884 = vst [vmem:[%s10] sm:$0xff] %v2883
  // Predicated region
  $region42: #{float_embedder_forward.1} parent=0 // pred_check
    _
  $region43: #{float_embedder_forward.1} parent=0 // pred_check_branch
    %2886 = sbr.rel (0) target = $region45
  $region44: #{float_embedder_forward.1} parent=0 // pred_region
    _
  $region45: #{float_embedder_forward.1} parent=0 // pred_fallthru
    _
  // Predicated region
  $region46: #{float_embedder_forward.1} parent=0 // pred_check
    _
  $region47: #{float_embedder_forward.1} parent=0 // pred_check_branch
    %2888 = sbr.rel (0) target = $region49
  $region48: #{float_embedder_forward.1} parent=0 // pred_region
    _
  $region49: #{float_embedder_forward.1} parent=0 // pred_fallthru
    _

</llo_original>
